<compile_context>
chip_gen: v5e
topology: v5e:2x2
jax: 0.10.0
libtpu: 0.0.40
codegen_flags: <defaults>
</compile_context>

<pallas_src>
import math
import functools

import jax
import jax.numpy as jnp
from jax.experimental import pallas as pl
from jax.experimental.pallas import tpu as pltpu


# ----------------------------------------------------------------------------
# Pallas kernels
# ----------------------------------------------------------------------------
def decoder_stack_kernel(x_ref, am_ref, pad_ref,
                         wq_ref, wk_ref, wv_ref, bq_ref, bk_ref, bv_ref,
                         wo_ref, bo_ref, ln1g_ref, ln1b_ref,
                         w1_ref, b1_ref, w2_ref, b2_ref, ln2g_ref, ln2b_ref,
                         o_ref, res_ref, *, nhead):
    """One post-LN decoder layer per grid step; grid = (batch, layer).

    The residual stream for the current batch element stays resident in the
    `res_ref` VMEM scratch across the inner ("arbitrary") layer axis, so x never
    round-trips HBM between layers.  Layer weights are indexed by the layer grid
    coordinate, so Pallas prefetches layer l+1's weights behind layer l's compute.
    """
    l = pl.program_id(1)
    S, D = res_ref.shape
    H = nhead
    hd = D // H

    # Initialize the residual stream from the embedding output at layer 0.
    @pl.when(l == 0)
    def _():
        res_ref[...] = x_ref[0]

    x = res_ref[...]                                    # (S, D) f32 residual stream
    xb = x.astype(jnp.bfloat16)
    xh = jnp.broadcast_to(xb, (H, S, D))                # head-batched activations

    # --- multi-head causal self-attention (head axis leading everywhere) -----
    q = jnp.einsum('hsd,hde->hse', xh, wq_ref[0],
                   preferred_element_type=jnp.float32) + bq_ref[0]   # (H, S, hd)
    k = jnp.einsum('hsd,hde->hse', xh, wk_ref[0],
                   preferred_element_type=jnp.float32) + bk_ref[0]
    v = jnp.einsum('hsd,hde->hse', xh, wv_ref[0],
                   preferred_element_type=jnp.float32) + bv_ref[0]

    s = jnp.einsum('hqe,hke->hqk', q.astype(jnp.bfloat16), k.astype(jnp.bfloat16),
                   preferred_element_type=jnp.float32) * (1.0 / math.sqrt(hd))
    # additive masks stay in f32 (attention pattern + key-padding bias)
    s = s + (am_ref[...] + pad_ref[0])[None, :, :]                    # (H, S, S)
    s = s - s.max(axis=-1, keepdims=True)
    p = jnp.exp(s)
    p = p * pl.reciprocal(p.sum(axis=-1, keepdims=True), approx=True)

    o = jnp.einsum('hqk,hke->hqe', p.astype(jnp.bfloat16), v.astype(jnp.bfloat16),
                   preferred_element_type=jnp.float32)                # (H, S, hd)
    attn = jnp.einsum('hqe,hed->hqd', o.astype(jnp.bfloat16), wo_ref[0],
                      preferred_element_type=jnp.float32).sum(axis=0) + bo_ref[0]

    # --- residual + LayerNorm 1 (post-LN, eps = 1e-5) -------------------------
    h1 = x + attn
    mu = h1.mean(axis=-1, keepdims=True)
    var = ((h1 - mu) ** 2).mean(axis=-1, keepdims=True)
    h1 = (h1 - mu) * jax.lax.rsqrt(var + 1e-5) * ln1g_ref[0] + ln1b_ref[0]

    # --- feed-forward (ReLU) ---------------------------------------------------
    f = jnp.dot(h1.astype(jnp.bfloat16), w1_ref[0],
                preferred_element_type=jnp.float32) + b1_ref[0]
    f = jnp.maximum(f, 0.0)
    f = jnp.dot(f.astype(jnp.bfloat16), w2_ref[0],
                preferred_element_type=jnp.float32) + b2_ref[0]

    # --- residual + LayerNorm 2 ------------------------------------------------
    h2 = h1 + f
    mu2 = h2.mean(axis=-1, keepdims=True)
    var2 = ((h2 - mu2) ** 2).mean(axis=-1, keepdims=True)
    out = (h2 - mu2) * jax.lax.rsqrt(var2 + 1e-5) * ln2g_ref[0] + ln2b_ref[0]

    res_ref[...] = out

    # Write this batch element's output once, after the last layer.
    @pl.when(l == pl.num_programs(1) - 1)
    def _():
        o_ref[0] = out.astype(o_ref.dtype)


def projection_kernel(x_ref, e_ref, b_ref, o_ref):
    """Tied output projection: logits = x @ E^T + b (E passed untransposed)."""
    logits = jax.lax.dot_general(
        x_ref[...].astype(jnp.bfloat16), e_ref[...],
        dimension_numbers=(((1,), (1,)), ((), ())),
        preferred_element_type=jnp.float32)
    o_ref[...] = (logits + b_ref[...]).astype(o_ref.dtype)


# ----------------------------------------------------------------------------
# pallas_call wrappers
# ----------------------------------------------------------------------------
def _clamp_vmem(nbytes):
    return int(min(max(nbytes, 16 * 1024 * 1024), 56 * 1024 * 1024))


def run_decoder_stack(x, attn_mask, pad_bias, prm):
    B, S, D = x.shape
    H = prm['nhead']
    hd = D // H
    L = prm['w1'].shape[0]
    F = prm['w1'].shape[-1]

    x_map = lambda b, l: (b, 0, 0)      # activations / padding bias (per batch)
    m_map = lambda b, l: (0, 0)         # shared (S,S) attention pattern
    w4_map = lambda b, l: (l, 0, 0, 0)  # per-layer 4D weights
    w3_map = lambda b, l: (l, 0, 0)     # per-layer 3D weights / biases / LN

    in_specs = [
        pl.BlockSpec((1, S, D), x_map),           # x (embedding output)
        pl.BlockSpec((S, S), m_map),              # attention mask (additive)
        pl.BlockSpec((1, 1, S), x_map),           # padding bias (additive)
        pl.BlockSpec((1, H, D, hd), w4_map),      # wq
        pl.BlockSpec((1, H, D, hd), w4_map),      # wk
        pl.BlockSpec((1, H, D, hd), w4_map),      # wv
        pl.BlockSpec((1, H, 1, hd), w4_map),      # bq
        pl.BlockSpec((1, H, 1, hd), w4_map),      # bk
        pl.BlockSpec((1, H, 1, hd), w4_map),      # bv
        pl.BlockSpec((1, H, hd, D), w4_map),      # wo (per-head)
        pl.BlockSpec((1, 1, D), w3_map),          # bo
        pl.BlockSpec((1, 1, D), w3_map),          # ln1_g
        pl.BlockSpec((1, 1, D), w3_map),          # ln1_b
        pl.BlockSpec((1, D, F), w3_map),          # w1
        pl.BlockSpec((1, 1, F), w3_map),          # b1
        pl.BlockSpec((1, F, D), w3_map),          # w2
        pl.BlockSpec((1, 1, D), w3_map),          # b2
        pl.BlockSpec((1, 1, D), w3_map),          # ln2_g
        pl.BlockSpec((1, 1, D), w3_map),          # ln2_b
    ]

    args = (x, attn_mask, pad_bias,
            prm['wq'], prm['wk'], prm['wv'], prm['bq'], prm['bk'], prm['bv'],
            prm['wo'], prm['bo'], prm['ln1_g'], prm['ln1_b'],
            prm['w1'], prm['b1'], prm['w2'], prm['b2'],
            prm['ln2_g'], prm['ln2_b'])

    # rough per-step working set (blocks, double buffers, compute intermediates)
    blk = (2 * S * D * 4 + S * S * 4 + S * 4
           + (4 * D * D + 2 * D * F) * 2              # bf16 weights
           + (3 * H * hd + 8 * D + F) * 4)            # f32 biases / LN params
    inter = (H * S * D * 2 + 3 * H * S * hd * 4 + 2 * H * S * S * 4
             + S * F * 4 + 6 * S * D * 4)
    vmem_limit = _clamp_vmem(2 * blk + 2 * inter + (4 << 20))

    flops = 2 * B * L * S * D * (4 * D + 2 * S + 2 * F)
    w_bytes = L * ((4 * D * D + 2 * D * F) * 2 + (3 * H * hd + 8 * D + F) * 4)
    cost = pl.CostEstimate(flops=int(flops),
                           transcendentals=int(B * L * H * S * S),
                           bytes_accessed=int(2 * B * S * D * 4 + S * S * 4
                                              + B * S * 4 + w_bytes))

    return pl.pallas_call(
        functools.partial(decoder_stack_kernel, nhead=H),
        out_shape=jax.ShapeDtypeStruct((B, S, D), jnp.float32),
        grid_spec=pltpu.PrefetchScalarGridSpec(
            num_scalar_prefetch=0,
            grid=(B, L),
            in_specs=in_specs,
            out_specs=pl.BlockSpec((1, S, D), x_map),
            scratch_shapes=[pltpu.VMEM((S, D), jnp.float32)]),
        compiler_params=pltpu.CompilerParams(
            dimension_semantics=("parallel", "arbitrary"),
            vmem_limit_bytes=vmem_limit),
        cost_estimate=cost,
    )(*args)


def _pick_tile(n, candidates):
    for c in candidates:
        if n % c == 0:
            return c
    return n


def run_projection(x2d, emb_pad_bf16, bias_pad):
    M, D = x2d.shape
    Vp = emb_pad_bf16.shape[0]
    tm = _pick_tile(M, (256, 128))
    tn = _pick_tile(Vp, (512, 256, 128))

    vmem_limit = _clamp_vmem(
        4 * (tm * D * 4 + tn * D * 2 + tn * 4 + tm * tn * 4) + (4 << 20))
    cost = pl.CostEstimate(flops=int(2 * M * Vp * D), transcendentals=0,
                           bytes_accessed=int(M * D * 4 + Vp * D * 2 + M * Vp * 4))

    return pl.pallas_call(
        projection_kernel,
        out_shape=jax.ShapeDtypeStruct((M, Vp), jnp.float32),
        grid_spec=pltpu.PrefetchScalarGridSpec(
            num_scalar_prefetch=0,
            grid=(M // tm, Vp // tn),
            in_specs=[pl.BlockSpec((tm, D), lambda i, j: (i, 0)),
                      pl.BlockSpec((tn, D), lambda i, j: (j, 0)),
                      pl.BlockSpec((1, tn), lambda i, j: (0, j))],
            out_specs=pl.BlockSpec((tm, tn), lambda i, j: (i, j))),
        compiler_params=pltpu.CompilerParams(
            dimension_semantics=("parallel", "parallel"),
            vmem_limit_bytes=vmem_limit),
        cost_estimate=cost,
    )(x2d, emb_pad_bf16, bias_pad)


# ----------------------------------------------------------------------------
# Parameter init + forward pass (glue in plain JAX)
# ----------------------------------------------------------------------------
def sinusoidal_pe(max_len, d_model):
    pos = jnp.arange(max_len, dtype=jnp.float32)[:, None]
    i = jnp.arange(0, d_model, 2, dtype=jnp.float32)
    div = jnp.exp(-math.log(10000.0) * i / d_model)
    pe = jnp.zeros((max_len, d_model), jnp.float32)
    pe = pe.at[:, 0::2].set(jnp.sin(pos * div))
    pe = pe.at[:, 1::2].set(jnp.cos(pos * div))
    return pe


def init_params(key, d_vocab, d_model, nhead, dim_feedforward, num_layers,
                max_len=64):
    s = 0.02
    V, D, H, F, L = d_vocab, d_model, nhead, dim_feedforward, num_layers
    hd = D // H
    k = jax.random.split(key, 6)

    emb = jax.random.normal(k[0], (V, D), jnp.float32) * s
    proj_b = jax.random.normal(k[1], (1, V), jnp.float32) * s
    wqkv = jax.random.normal(k[2], (L, D, 3 * D), jnp.float32) * s
    wo = jax.random.normal(k[3], (L, D, D), jnp.float32) * s
    w1 = jax.random.normal(k[4], (L, D, F), jnp.float32) * s
    w2 = jax.random.normal(k[5], (L, F, D), jnp.float32) * s

    def split_heads(w):            # (L, D, D) -> (L, H, D, hd), head axis leading
        return jnp.transpose(w.reshape(L, D, H, hd), (0, 2, 1, 3))

    Vp = ((V + 127) // 128) * 128  # lane-dense padded vocab for the projection
    emb_pad = jnp.zeros((Vp, D), jnp.bfloat16).at[:V].set(emb.astype(jnp.bfloat16))
    proj_b_pad = jnp.zeros((1, Vp), jnp.float32).at[:, :V].set(proj_b)

    return dict(
        d_vocab=V, d_model=D, nhead=H, dim_feedforward=F, num_layers=L,
        embedding=emb,                 # f32 table used for the gather
        pe=sinusoidal_pe(max_len, D),
        emb_pad_bf16=emb_pad,          # tied weight (untransposed) for projection
        proj_b_pad=proj_b_pad,
        # stacked, kernel-ready per-layer weights (leading layer axis, bf16 matmuls)
        wq=split_heads(wqkv[:, :, 0 * D:1 * D]).astype(jnp.bfloat16),
        wk=split_heads(wqkv[:, :, 1 * D:2 * D]).astype(jnp.bfloat16),
        wv=split_heads(wqkv[:, :, 2 * D:3 * D]).astype(jnp.bfloat16),
        bq=jnp.zeros((L, H, 1, hd), jnp.float32),
        bk=jnp.zeros((L, H, 1, hd), jnp.float32),
        bv=jnp.zeros((L, H, 1, hd), jnp.float32),
        wo=wo.reshape(L, H, hd, D).astype(jnp.bfloat16),
        bo=jnp.zeros((L, 1, D), jnp.float32),
        ln1_g=jnp.ones((L, 1, D), jnp.float32),
        ln1_b=jnp.zeros((L, 1, D), jnp.float32),
        w1=w1.astype(jnp.bfloat16),
        b1=jnp.zeros((L, 1, F), jnp.float32),
        w2=w2.astype(jnp.bfloat16),
        b2=jnp.zeros((L, 1, D), jnp.float32),
        ln2_g=jnp.ones((L, 1, D), jnp.float32),
        ln2_b=jnp.zeros((L, 1, D), jnp.float32),
    )


def soweli_toki_forward(params, inputs, attention_mask=None, padding_mask=None):
    """inputs: (B, S) int32 token ids; attention_mask: (S, S) additive float;
       padding_mask: (B, S) bool (True = pad).  Returns (B, S, d_vocab) logits."""
    B, S = inputs.shape
    D, V = params['d_model'], params['d_vocab']

    # Embedding gather (JAX glue) + sqrt scaling + sinusoidal positional enc.
    x = jnp.take(params['embedding'], inputs, axis=0) * math.sqrt(D)
    x = (x + params['pe'][:S][None, :, :]).astype(jnp.float32)
    # TODO(synk): dropout / attention_dropout omitted (eval-mode identity).

    if attention_mask is None:
        attention_mask = jnp.zeros((S, S), jnp.float32)
    attn_mask = attention_mask.astype(jnp.float32)            # (S, S), shared
    if padding_mask is None:
        pad_bias = jnp.zeros((B, 1, S), jnp.float32)
    else:
        pad_bias = jnp.where(padding_mask, -1e9, 0.0).astype(jnp.float32)[:, None, :]

    x = run_decoder_stack(x, attn_mask, pad_bias, params)

    logits = run_projection(x.reshape(B * S, D),
                            params['emb_pad_bf16'], params['proj_b_pad'])
    return logits[:, :V].reshape(B, S, V)


# ----------------------------------------------------------------------------
if __name__ == "__main__":
    d_vocab, d_model, nhead = 50, 32, 2
    dim_feedforward, num_layers = 64, 2
    B, S = 2, 8

    key = jax.random.PRNGKey(0)
    k_in, k_par = jax.random.split(key)

    inputs = jax.random.randint(k_in, (B, S), 0, d_vocab, dtype=jnp.int32)
    params = init_params(k_par, d_vocab, d_model, nhead, dim_feedforward,
                         num_layers, max_len=64)

    # causal (look-ahead) attention mask + all-valid padding mask
    idx = jnp.arange(S)
    causal_mask = jnp.where(idx[None, :] > idx[:, None], -1e9, 0.0).astype(jnp.float32)
    padding_mask = jnp.zeros((B, S), dtype=bool)

    logits = soweli_toki_forward(params, inputs,
                                 attention_mask=causal_mask,
                                 padding_mask=padding_mask)
    jax.block_until_ready(logits)
    assert logits.shape == (B, S, d_vocab)
    assert bool(jnp.all(jnp.isfinite(logits)))
    print("KERNEL_OK")
</pallas_src>

<mosaic_0001>
module attributes {stable_mosaic.version = 11 : i64} {
  func.func @decoder_stack_kernel(%arg0: i32, %arg1: i32, %arg2: memref<1x8x32xf32, #tpu.memory_space<vmem>>, %arg3: memref<8x8xf32, #tpu.memory_space<vmem>>, %arg4: memref<1x1x8xf32, #tpu.memory_space<vmem>>, %arg5: memref<1x2x32x16xbf16, #tpu.memory_space<vmem>>, %arg6: memref<1x2x32x16xbf16, #tpu.memory_space<vmem>>, %arg7: memref<1x2x32x16xbf16, #tpu.memory_space<vmem>>, %arg8: memref<1x2x1x16xf32, #tpu.memory_space<vmem>>, %arg9: memref<1x2x1x16xf32, #tpu.memory_space<vmem>>, %arg10: memref<1x2x1x16xf32, #tpu.memory_space<vmem>>, %arg11: memref<1x2x16x32xbf16, #tpu.memory_space<vmem>>, %arg12: memref<1x1x32xf32, #tpu.memory_space<vmem>>, %arg13: memref<1x1x32xf32, #tpu.memory_space<vmem>>, %arg14: memref<1x1x32xf32, #tpu.memory_space<vmem>>, %arg15: memref<1x32x64xbf16, #tpu.memory_space<vmem>>, %arg16: memref<1x1x64xf32, #tpu.memory_space<vmem>>, %arg17: memref<1x64x32xbf16, #tpu.memory_space<vmem>>, %arg18: memref<1x1x32xf32, #tpu.memory_space<vmem>>, %arg19: memref<1x1x32xf32, #tpu.memory_space<vmem>>, %arg20: memref<1x1x32xf32, #tpu.memory_space<vmem>>, %arg21: memref<1x8x32xf32, #tpu.memory_space<vmem>>, %arg22: memref<8x32xf32, #tpu.memory_space<vmem>>) attributes {dimension_semantics = [#tpu.dimension_semantics<parallel>, #tpu.dimension_semantics<arbitrary>], iteration_bounds = array<i64: 2, 2>, scalar_prefetch = 0 : i64, scratch_operands = 1 : i64, tpu.core_type = #tpu.core_type<tc>, window_params = [{transform_indices = @transform_0, window_bounds = array<i64: 1, 8, 32>}, {pipeline_mode = #tpu.pipeline_mode<synchronous>, transform_indices = @transform_1, window_bounds = array<i64: 8, 8>}, {transform_indices = @transform_2, window_bounds = array<i64: 1, 1, 8>}, {transform_indices = @transform_3, window_bounds = array<i64: 1, 2, 32, 16>}, {transform_indices = @transform_4, window_bounds = array<i64: 1, 2, 32, 16>}, {transform_indices = @transform_5, window_bounds = array<i64: 1, 2, 32, 16>}, {transform_indices = @transform_6, window_bounds = array<i64: 1, 2, 1, 16>}, {transform_indices = @transform_7, window_bounds = array<i64: 1, 2, 1, 16>}, {transform_indices = @transform_8, window_bounds = array<i64: 1, 2, 1, 16>}, {transform_indices = @transform_9, window_bounds = array<i64: 1, 2, 16, 32>}, {transform_indices = @transform_10, window_bounds = array<i64: 1, 1, 32>}, {transform_indices = @transform_11, window_bounds = array<i64: 1, 1, 32>}, {transform_indices = @transform_12, window_bounds = array<i64: 1, 1, 32>}, {transform_indices = @transform_13, window_bounds = array<i64: 1, 32, 64>}, {transform_indices = @transform_14, window_bounds = array<i64: 1, 1, 64>}, {transform_indices = @transform_15, window_bounds = array<i64: 1, 64, 32>}, {transform_indices = @transform_16, window_bounds = array<i64: 1, 1, 32>}, {transform_indices = @transform_17, window_bounds = array<i64: 1, 1, 32>}, {transform_indices = @transform_18, window_bounds = array<i64: 1, 1, 32>}, {transform_indices = @transform_19, window_bounds = array<i64: 1, 8, 32>}]} {
    %c0_i32 = arith.constant 0 : i32
    %0 = arith.cmpi eq, %arg1, %c0_i32 : i32
    %1 = arith.extui %0 : i1 to i32
    %c0_i32_0 = arith.constant 0 : i32
    %2 = arith.cmpi ne, %1, %c0_i32_0 : i32
    scf.if %2 {
      %c0_87 = arith.constant 0 : index
      %c0_88 = arith.constant 0 : index
      %c0_89 = arith.constant 0 : index
      %139 = vector.load %arg2[%c0_87, %c0_88, %c0_89] : memref<1x8x32xf32, #tpu.memory_space<vmem>>, vector<1x8x32xf32>
      %140 = vector.shape_cast %139 : vector<1x8x32xf32> to vector<8x32xf32>
      %c0_90 = arith.constant 0 : index
      %c0_91 = arith.constant 0 : index
      %141 = vector.load %arg22[%c0_90, %c0_91] : memref<8x32xf32, #tpu.memory_space<vmem>>, vector<8x32xf32>
      tpu.vector_store %arg22[%c0_90, %c0_91], %140 {strides = array<i32>} : memref<8x32xf32, #tpu.memory_space<vmem>>, vector<8x32xf32>,
    } else {
    }
    %c0 = arith.constant 0 : index
    %c0_1 = arith.constant 0 : index
    %3 = vector.load %arg22[%c0, %c0_1] : memref<8x32xf32, #tpu.memory_space<vmem>>, vector<8x32xf32>
    %4 = arith.truncf %3 : vector<8x32xf32> to vector<8x32xbf16>
    %5 = vector.shape_cast %4 : vector<8x32xbf16> to vector<1x8x32xbf16>
    %6 = vector.broadcast %5 : vector<1x8x32xbf16> to vector<2x8x32xbf16>
    %c0_2 = arith.constant 0 : index
    %c0_3 = arith.constant 0 : index
    %c0_4 = arith.constant 0 : index
    %c0_5 = arith.constant 0 : index
    %7 = vector.load %arg5[%c0_2, %c0_3, %c0_4, %c0_5] : memref<1x2x32x16xbf16, #tpu.memory_space<vmem>>, vector<1x2x32x16xbf16>
    %8 = vector.shape_cast %7 : vector<1x2x32x16xbf16> to vector<2x32x16xbf16>
    "tpu.trace_start"() <{level = 10 : i32, message = "hsd,hde->hse"}> : () -> ()
    %cst = arith.constant dense<0.000000e+00> : vector<2x8x16xf32>
    %9 = tpu.matmul %6, %8, %cst {dimension_numbers = #tpu.dot_dimension_numbers<[2], [1], [1], [2], [0, 0, 0, 1, 1, 2], [0], [0]>} : vector<2x8x32xbf16>, vector<2x32x16xbf16>, vector<2x8x16xf32> -> vector<2x8x16xf32>
    "tpu.trace_stop"() : () -> ()
    %c0_6 = arith.constant 0 : index
    %c0_7 = arith.constant 0 : index
    %c0_8 = arith.constant 0 : index
    %c0_9 = arith.constant 0 : index
    %10 = vector.load %arg8[%c0_6, %c0_7, %c0_8, %c0_9] : memref<1x2x1x16xf32, #tpu.memory_space<vmem>>, vector<1x2x1x16xf32>
    %11 = vector.shape_cast %10 : vector<1x2x1x16xf32> to vector<2x1x16xf32>
    %12 = vector.broadcast %11 : vector<2x1x16xf32> to vector<2x8x16xf32>
    %13 = arith.addf %9, %12 : vector<2x8x16xf32>
    %c0_10 = arith.constant 0 : index
    %c0_11 = arith.constant 0 : index
    %c0_12 = arith.constant 0 : index
    %c0_13 = arith.constant 0 : index
    %14 = vector.load %arg6[%c0_10, %c0_11, %c0_12, %c0_13] : memref<1x2x32x16xbf16, #tpu.memory_space<vmem>>, vector<1x2x32x16xbf16>
    %15 = vector.shape_cast %14 : vector<1x2x32x16xbf16> to vector<2x32x16xbf16>
    "tpu.trace_start"() <{level = 10 : i32, message = "hsd,hde->hse"}> : () -> ()
    %cst_14 = arith.constant dense<0.000000e+00> : vector<2x8x16xf32>
    %16 = tpu.matmul %6, %15, %cst_14 {dimension_numbers = #tpu.dot_dimension_numbers<[2], [1], [1], [2], [0, 0, 0, 1, 1, 2], [0], [0]>} : vector<2x8x32xbf16>, vector<2x32x16xbf16>, vector<2x8x16xf32> -> vector<2x8x16xf32>
    "tpu.trace_stop"() : () -> ()
    %c0_15 = arith.constant 0 : index
    %c0_16 = arith.constant 0 : index
    %c0_17 = arith.constant 0 : index
    %c0_18 = arith.constant 0 : index
    %17 = vector.load %arg9[%c0_15, %c0_16, %c0_17, %c0_18] : memref<1x2x1x16xf32, #tpu.memory_space<vmem>>, vector<1x2x1x16xf32>
    %18 = vector.shape_cast %17 : vector<1x2x1x16xf32> to vector<2x1x16xf32>
    %19 = vector.broadcast %18 : vector<2x1x16xf32> to vector<2x8x16xf32>
    %20 = arith.addf %16, %19 : vector<2x8x16xf32>
    %c0_19 = arith.constant 0 : index
    %c0_20 = arith.constant 0 : index
    %c0_21 = arith.constant 0 : index
    %c0_22 = arith.constant 0 : index
    %21 = vector.load %arg7[%c0_19, %c0_20, %c0_21, %c0_22] : memref<1x2x32x16xbf16, #tpu.memory_space<vmem>>, vector<1x2x32x16xbf16>
    %22 = vector.shape_cast %21 : vector<1x2x32x16xbf16> to vector<2x32x16xbf16>
    "tpu.trace_start"() <{level = 10 : i32, message = "hsd,hde->hse"}> : () -> ()
    %cst_23 = arith.constant dense<0.000000e+00> : vector<2x8x16xf32>
    %23 = tpu.matmul %6, %22, %cst_23 {dimension_numbers = #tpu.dot_dimension_numbers<[2], [1], [1], [2], [0, 0, 0, 1, 1, 2], [0], [0]>} : vector<2x8x32xbf16>, vector<2x32x16xbf16>, vector<2x8x16xf32> -> vector<2x8x16xf32>
    "tpu.trace_stop"() : () -> ()
    %c0_24 = arith.constant 0 : index
    %c0_25 = arith.constant 0 : index
    %c0_26 = arith.constant 0 : index
    %c0_27 = arith.constant 0 : index
    %24 = vector.load %arg10[%c0_24, %c0_25, %c0_26, %c0_27] : memref<1x2x1x16xf32, #tpu.memory_space<vmem>>, vector<1x2x1x16xf32>
    %25 = vector.shape_cast %24 : vector<1x2x1x16xf32> to vector<2x1x16xf32>
    %26 = vector.broadcast %25 : vector<2x1x16xf32> to vector<2x8x16xf32>
    %27 = arith.addf %23, %26 : vector<2x8x16xf32>
    %28 = arith.truncf %13 : vector<2x8x16xf32> to vector<2x8x16xbf16>
    %29 = arith.truncf %20 : vector<2x8x16xf32> to vector<2x8x16xbf16>
    "tpu.trace_start"() <{level = 10 : i32, message = "hqe,hke->hqk"}> : () -> ()
    %cst_28 = arith.constant dense<0.000000e+00> : vector<2x8x8xf32>
    %30 = tpu.matmul %28, %29, %cst_28 {dimension_numbers = #tpu.dot_dimension_numbers<[2], [2], [1], [1], [0, 0, 0, 1, 1, 1], [0], [0]>} : vector<2x8x16xbf16>, vector<2x8x16xbf16>, vector<2x8x8xf32> -> vector<2x8x8xf32>
    "tpu.trace_stop"() : () -> ()
    %cst_29 = arith.constant 2.500000e-01 : f32
    %31 = vector.broadcast %cst_29 : f32 to vector<2x8x8xf32>
    %32 = arith.mulf %30, %31 : vector<2x8x8xf32>
    %c0_30 = arith.constant 0 : index
    %c0_31 = arith.constant 0 : index
    %33 = vector.load %arg3[%c0_30, %c0_31] : memref<8x8xf32, #tpu.memory_space<vmem>>, vector<8x8xf32>
    %c0_32 = arith.constant 0 : index
    %c0_33 = arith.constant 0 : index
    %c0_34 = arith.constant 0 : index
    %34 = vector.load %arg4[%c0_32, %c0_33, %c0_34] : memref<1x1x8xf32, #tpu.memory_space<vmem>>, vector<1x1x8xf32>
    %35 = vector.shape_cast %34 : vector<1x1x8xf32> to vector<1x8xf32>
    %36 = vector.broadcast %35 : vector<1x8xf32> to vector<8x8xf32>
    %37 = arith.addf %33, %36 : vector<8x8xf32>
    %38 = vector.shape_cast %37 : vector<8x8xf32> to vector<1x8x8xf32>
    %39 = vector.broadcast %38 : vector<1x8x8xf32> to vector<2x8x8xf32>
    %40 = arith.addf %32, %39 : vector<2x8x8xf32>
    %cst_35 = arith.constant dense<0xFF800000> : vector<2x8xf32>
    %41 = vector.multi_reduction <maximumf>, %40, %cst_35 [2] : vector<2x8x8xf32> to vector<2x8xf32>
    %42 = vector.shape_cast %41 : vector<2x8xf32> to vector<2x8x1xf32>
    %43 = vector.broadcast %42 : vector<2x8x1xf32> to vector<2x8x8xf32>
    %44 = arith.subf %40, %43 : vector<2x8x8xf32>
    %45 = math.exp %44 : vector<2x8x8xf32>
    %cst_36 = arith.constant dense<0.000000e+00> : vector<2x8xf32>
    %46 = vector.multi_reduction <add>, %45, %cst_36 [2] : vector<2x8x8xf32> to vector<2x8xf32>
    %47 = vector.shape_cast %46 : vector<2x8xf32> to vector<2x8x1xf32>
    %48 = tpu.reciprocal %47 {approx = true} : vector<2x8x1xf32> -> vector<2x8x1xf32>
    %49 = vector.broadcast %48 : vector<2x8x1xf32> to vector<2x8x8xf32>
    %50 = arith.mulf %45, %49 : vector<2x8x8xf32>
    %51 = arith.truncf %50 : vector<2x8x8xf32> to vector<2x8x8xbf16>
    %52 = arith.truncf %27 : vector<2x8x16xf32> to vector<2x8x16xbf16>
    "tpu.trace_start"() <{level = 10 : i32, message = "hqk,hke->hqe"}> : () -> ()
    %cst_37 = arith.constant dense<0.000000e+00> : vector<2x8x16xf32>
    %53 = tpu.matmul %51, %52, %cst_37 {dimension_numbers = #tpu.dot_dimension_numbers<[2], [1], [1], [2], [0, 0, 0, 1, 1, 2], [0], [0]>} : vector<2x8x8xbf16>, vector<2x8x16xbf16>, vector<2x8x16xf32> -> vector<2x8x16xf32>
    "tpu.trace_stop"() : () -> ()
    %54 = arith.truncf %53 : vector<2x8x16xf32> to vector<2x8x16xbf16>
    %c0_38 = arith.constant 0 : index
    %c0_39 = arith.constant 0 : index
    %c0_40 = arith.constant 0 : index
    %c0_41 = arith.constant 0 : index
    %55 = vector.load %arg11[%c0_38, %c0_39, %c0_40, %c0_41] : memref<1x2x16x32xbf16, #tpu.memory_space<vmem>>, vector<1x2x16x32xbf16>
    %56 = vector.shape_cast %55 : vector<1x2x16x32xbf16> to vector<2x16x32xbf16>
    "tpu.trace_start"() <{level = 10 : i32, message = "hqe,hed->hqd"}> : () -> ()
    %cst_42 = arith.constant dense<0.000000e+00> : vector<2x8x32xf32>
    %57 = tpu.matmul %54, %56, %cst_42 {dimension_numbers = #tpu.dot_dimension_numbers<[2], [1], [1], [2], [0, 0, 0, 1, 1, 2], [0], [0]>} : vector<2x8x16xbf16>, vector<2x16x32xbf16>, vector<2x8x32xf32> -> vector<2x8x32xf32>
    "tpu.trace_stop"() : () -> ()
    %cst_43 = arith.constant dense<0.000000e+00> : vector<8x32xf32>
    %58 = vector.multi_reduction <add>, %57, %cst_43 [0] : vector<2x8x32xf32> to vector<8x32xf32>
    %c0_44 = arith.constant 0 : index
    %c0_45 = arith.constant 0 : index
    %c0_46 = arith.constant 0 : index
    %59 = vector.load %arg12[%c0_44, %c0_45, %c0_46] : memref<1x1x32xf32, #tpu.memory_space<vmem>>, vector<1x1x32xf32>
    %60 = vector.shape_cast %59 : vector<1x1x32xf32> to vector<1x32xf32>
    %61 = vector.broadcast %60 : vector<1x32xf32> to vector<8x32xf32>
    %62 = arith.addf %58, %61 : vector<8x32xf32>
    %63 = arith.addf %3, %62 : vector<8x32xf32>
    %cst_47 = arith.constant dense<0.000000e+00> : vector<8xf32>
    %64 = vector.multi_reduction <add>, %63, %cst_47 [1] : vector<8x32xf32> to vector<8xf32>
    %65 = vector.shape_cast %64 : vector<8xf32> to vector<8x1xf32>
    %cst_48 = arith.constant 3.200000e+01 : f32
    %66 = vector.broadcast %cst_48 : f32 to vector<8x1xf32>
    %67 = arith.divf %65, %66 : vector<8x1xf32>
    %68 = vector.broadcast %67 : vector<8x1xf32> to vector<8x32xf32>
    %69 = arith.subf %63, %68 : vector<8x32xf32>
    %70 = arith.mulf %69, %69 : vector<8x32xf32>
    %cst_49 = arith.constant dense<0.000000e+00> : vector<8xf32>
    %71 = vector.multi_reduction <add>, %70, %cst_49 [1] : vector<8x32xf32> to vector<8xf32>
    %72 = vector.shape_cast %71 : vector<8xf32> to vector<8x1xf32>
    %cst_50 = arith.constant 3.200000e+01 : f32
    %73 = vector.broadcast %cst_50 : f32 to vector<8x1xf32>
    %74 = arith.divf %72, %73 : vector<8x1xf32>
    %75 = vector.broadcast %67 : vector<8x1xf32> to vector<8x32xf32>
    %76 = arith.subf %63, %75 : vector<8x32xf32>
    %cst_51 = arith.constant 9.99999974E-6 : f32
    %77 = vector.broadcast %cst_51 : f32 to vector<8x1xf32>
    %78 = arith.addf %74, %77 : vector<8x1xf32>
    %79 = math.rsqrt %78 : vector<8x1xf32>
    %80 = vector.broadcast %79 : vector<8x1xf32> to vector<8x32xf32>
    %81 = arith.mulf %76, %80 : vector<8x32xf32>
    %c0_52 = arith.constant 0 : index
    %c0_53 = arith.constant 0 : index
    %c0_54 = arith.constant 0 : index
    %82 = vector.load %arg13[%c0_52, %c0_53, %c0_54] : memref<1x1x32xf32, #tpu.memory_space<vmem>>, vector<1x1x32xf32>
    %83 = vector.shape_cast %82 : vector<1x1x32xf32> to vector<1x32xf32>
    %84 = vector.broadcast %83 : vector<1x32xf32> to vector<8x32xf32>
    %85 = arith.mulf %81, %84 : vector<8x32xf32>
    %c0_55 = arith.constant 0 : index
    %c0_56 = arith.constant 0 : index
    %c0_57 = arith.constant 0 : index
    %86 = vector.load %arg14[%c0_55, %c0_56, %c0_57] : memref<1x1x32xf32, #tpu.memory_space<vmem>>, vector<1x1x32xf32>
    %87 = vector.shape_cast %86 : vector<1x1x32xf32> to vector<1x32xf32>
    %88 = vector.broadcast %87 : vector<1x32xf32> to vector<8x32xf32>
    %89 = arith.addf %85, %88 : vector<8x32xf32>
    %90 = arith.truncf %89 : vector<8x32xf32> to vector<8x32xbf16>
    %c0_58 = arith.constant 0 : index
    %c0_59 = arith.constant 0 : index
    %c0_60 = arith.constant 0 : index
    %91 = vector.load %arg15[%c0_58, %c0_59, %c0_60] : memref<1x32x64xbf16, #tpu.memory_space<vmem>>, vector<1x32x64xbf16>
    %92 = vector.shape_cast %91 : vector<1x32x64xbf16> to vector<32x64xbf16>
    %cst_61 = arith.constant dense<0.000000e+00> : vector<8x64xf32>
    %93 = tpu.matmul %90, %92, %cst_61 {dimension_numbers = #tpu.dot_dimension_numbers<[1], [0], [0], [1], [0, 0, 1, 1], [], []>} : vector<8x32xbf16>, vector<32x64xbf16>, vector<8x64xf32> -> vector<8x64xf32>
    %c0_62 = arith.constant 0 : index
    %c0_63 = arith.constant 0 : index
    %c0_64 = arith.constant 0 : index
    %94 = vector.load %arg16[%c0_62, %c0_63, %c0_64] : memref<1x1x64xf32, #tpu.memory_space<vmem>>, vector<1x1x64xf32>
    %95 = vector.shape_cast %94 : vector<1x1x64xf32> to vector<1x64xf32>
    %96 = vector.broadcast %95 : vector<1x64xf32> to vector<8x64xf32>
    %97 = arith.addf %93, %96 : vector<8x64xf32>
    %cst_65 = arith.constant 0.000000e+00 : f32
    %98 = vector.broadcast %cst_65 : f32 to vector<8x64xf32>
    %99 = arith.maximumf %97, %98 : vector<8x64xf32>
    %100 = arith.truncf %99 : vector<8x64xf32> to vector<8x64xbf16>
    %c0_66 = arith.constant 0 : index
    %c0_67 = arith.constant 0 : index
    %c0_68 = arith.constant 0 : index
    %101 = vector.load %arg17[%c0_66, %c0_67, %c0_68] : memref<1x64x32xbf16, #tpu.memory_space<vmem>>, vector<1x64x32xbf16>
    %102 = vector.shape_cast %101 : vector<1x64x32xbf16> to vector<64x32xbf16>
    %cst_69 = arith.constant dense<0.000000e+00> : vector<8x32xf32>
    %103 = tpu.matmul %100, %102, %cst_69 {dimension_numbers = #tpu.dot_dimension_numbers<[1], [0], [0], [1], [0, 0, 1, 1], [], []>} : vector<8x64xbf16>, vector<64x32xbf16>, vector<8x32xf32> -> vector<8x32xf32>
    %c0_70 = arith.constant 0 : index
    %c0_71 = arith.constant 0 : index
    %c0_72 = arith.constant 0 : index
    %104 = vector.load %arg18[%c0_70, %c0_71, %c0_72] : memref<1x1x32xf32, #tpu.memory_space<vmem>>, vector<1x1x32xf32>
    %105 = vector.shape_cast %104 : vector<1x1x32xf32> to vector<1x32xf32>
    %106 = vector.broadcast %105 : vector<1x32xf32> to vector<8x32xf32>
    %107 = arith.addf %103, %106 : vector<8x32xf32>
    %108 = arith.addf %89, %107 : vector<8x32xf32>
    %cst_73 = arith.constant dense<0.000000e+00> : vector<8xf32>
    %109 = vector.multi_reduction <add>, %108, %cst_73 [1] : vector<8x32xf32> to vector<8xf32>
    %110 = vector.shape_cast %109 : vector<8xf32> to vector<8x1xf32>
    %cst_74 = arith.constant 3.200000e+01 : f32
    %111 = vector.broadcast %cst_74 : f32 to vector<8x1xf32>
    %112 = arith.divf %110, %111 : vector<8x1xf32>
    %113 = vector.broadcast %112 : vector<8x1xf32> to vector<8x32xf32>
    %114 = arith.subf %108, %113 : vector<8x32xf32>
    %115 = arith.mulf %114, %114 : vector<8x32xf32>
    %cst_75 = arith.constant dense<0.000000e+00> : vector<8xf32>
    %116 = vector.multi_reduction <add>, %115, %cst_75 [1] : vector<8x32xf32> to vector<8xf32>
    %117 = vector.shape_cast %116 : vector<8xf32> to vector<8x1xf32>
    %cst_76 = arith.constant 3.200000e+01 : f32
    %118 = vector.broadcast %cst_76 : f32 to vector<8x1xf32>
    %119 = arith.divf %117, %118 : vector<8x1xf32>
    %120 = vector.broadcast %112 : vector<8x1xf32> to vector<8x32xf32>
    %121 = arith.subf %108, %120 : vector<8x32xf32>
    %cst_77 = arith.constant 9.99999974E-6 : f32
    %122 = vector.broadcast %cst_77 : f32 to vector<8x1xf32>
    %123 = arith.addf %119, %122 : vector<8x1xf32>
    %124 = math.rsqrt %123 : vector<8x1xf32>
    %125 = vector.broadcast %124 : vector<8x1xf32> to vector<8x32xf32>
    %126 = arith.mulf %121, %125 : vector<8x32xf32>
    %c0_78 = arith.constant 0 : index
    %c0_79 = arith.constant 0 : index
    %c0_80 = arith.constant 0 : index
    %127 = vector.load %arg19[%c0_78, %c0_79, %c0_80] : memref<1x1x32xf32, #tpu.memory_space<vmem>>, vector<1x1x32xf32>
    %128 = vector.shape_cast %127 : vector<1x1x32xf32> to vector<1x32xf32>
    %129 = vector.broadcast %128 : vector<1x32xf32> to vector<8x32xf32>
    %130 = arith.mulf %126, %129 : vector<8x32xf32>
    %c0_81 = arith.constant 0 : index
    %c0_82 = arith.constant 0 : index
    %c0_83 = arith.constant 0 : index
    %131 = vector.load %arg20[%c0_81, %c0_82, %c0_83] : memref<1x1x32xf32, #tpu.memory_space<vmem>>, vector<1x1x32xf32>
    %132 = vector.shape_cast %131 : vector<1x1x32xf32> to vector<1x32xf32>
    %133 = vector.broadcast %132 : vector<1x32xf32> to vector<8x32xf32>
    %134 = arith.addf %130, %133 : vector<8x32xf32>
    %c0_84 = arith.constant 0 : index
    %c0_85 = arith.constant 0 : index
    %135 = vector.load %arg22[%c0_84, %c0_85] : memref<8x32xf32, #tpu.memory_space<vmem>>, vector<8x32xf32>
    tpu.vector_store %arg22[%c0_84, %c0_85], %134 {strides = array<i32>} : memref<8x32xf32, #tpu.memory_space<vmem>>, vector<8x32xf32>,
    %c1_i32 = arith.constant 1 : i32
    %136 = arith.cmpi eq, %arg1, %c1_i32 : i32
    %137 = arith.extui %136 : i1 to i32
    %c0_i32_86 = arith.constant 0 : i32
    %138 = arith.cmpi ne, %137, %c0_i32_86 : i32
    scf.if %138 {
      %c0_87 = arith.constant 0 : index
      %c0_88 = arith.constant 0 : index
      %c0_89 = arith.constant 0 : index
      %139 = vector.load %arg21[%c0_87, %c0_88, %c0_89] : memref<1x8x32xf32, #tpu.memory_space<vmem>>, vector<1x8x32xf32>
      %140 = vector.shape_cast %139 : vector<1x8x32xf32> to vector<8x32xf32>
      %141 = vector.shape_cast %134 : vector<8x32xf32> to vector<1x8x32xf32>
      tpu.vector_store %arg21[%c0_87, %c0_88, %c0_89], %141 {strides = array<i32>} : memref<1x8x32xf32, #tpu.memory_space<vmem>>, vector<1x8x32xf32>,
    } else {
    }
    return
  }
  func.func @transform_0(%arg0: i32, %arg1: i32) -> (i32, i32, i32) {
    %c0_i32 = arith.constant 0 : i32
    %c0_i32_0 = arith.constant 0 : i32
    %c0_i32_1 = arith.constant 0 : i32
    return %arg0, %c0_i32, %c0_i32_0 : i32, i32, i32
  }
  func.func @transform_1(%arg0: i32, %arg1: i32) -> (i32, i32) {
    %c0_i32 = arith.constant 0 : i32
    %c0_i32_0 = arith.constant 0 : i32
    %c0_i32_1 = arith.constant 0 : i32
    return %c0_i32, %c0_i32_0 : i32, i32
  }
  func.func @transform_2(%arg0: i32, %arg1: i32) -> (i32, i32, i32) {
    %c0_i32 = arith.constant 0 : i32
    %c0_i32_0 = arith.constant 0 : i32
    %c0_i32_1 = arith.constant 0 : i32
    return %arg0, %c0_i32, %c0_i32_0 : i32, i32, i32
  }
  func.func @transform_3(%arg0: i32, %arg1: i32) -> (i32, i32, i32, i32) {
    %c0_i32 = arith.constant 0 : i32
    %c0_i32_0 = arith.constant 0 : i32
    %c0_i32_1 = arith.constant 0 : i32
    %c0_i32_2 = arith.constant 0 : i32
    return %arg1, %c0_i32, %c0_i32_0, %c0_i32_1 : i32, i32, i32, i32
  }
  func.func @transform_4(%arg0: i32, %arg1: i32) -> (i32, i32, i32, i32) {
    %c0_i32 = arith.constant 0 : i32
    %c0_i32_0 = arith.constant 0 : i32
    %c0_i32_1 = arith.constant 0 : i32
    %c0_i32_2 = arith.constant 0 : i32
    return %arg1, %c0_i32, %c0_i32_0, %c0_i32_1 : i32, i32, i32, i32
  }
  func.func @transform_5(%arg0: i32, %arg1: i32) -> (i32, i32, i32, i32) {
    %c0_i32 = arith.constant 0 : i32
    %c0_i32_0 = arith.constant 0 : i32
    %c0_i32_1 = arith.constant 0 : i32
    %c0_i32_2 = arith.constant 0 : i32
    return %arg1, %c0_i32, %c0_i32_0, %c0_i32_1 : i32, i32, i32, i32
  }
  func.func @transform_6(%arg0: i32, %arg1: i32) -> (i32, i32, i32, i32) {
    %c0_i32 = arith.constant 0 : i32
    %c0_i32_0 = arith.constant 0 : i32
    %c0_i32_1 = arith.constant 0 : i32
    %c0_i32_2 = arith.constant 0 : i32
    return %arg1, %c0_i32, %c0_i32_0, %c0_i32_1 : i32, i32, i32, i32
  }
  func.func @transform_7(%arg0: i32, %arg1: i32) -> (i32, i32, i32, i32) {
    %c0_i32 = arith.constant 0 : i32
    %c0_i32_0 = arith.constant 0 : i32
    %c0_i32_1 = arith.constant 0 : i32
    %c0_i32_2 = arith.constant 0 : i32
    return %arg1, %c0_i32, %c0_i32_0, %c0_i32_1 : i32, i32, i32, i32
  }
  func.func @transform_8(%arg0: i32, %arg1: i32) -> (i32, i32, i32, i32) {
    %c0_i32 = arith.constant 0 : i32
    %c0_i32_0 = arith.constant 0 : i32
    %c0_i32_1 = arith.constant 0 : i32
    %c0_i32_2 = arith.constant 0 : i32
    return %arg1, %c0_i32, %c0_i32_0, %c0_i32_1 : i32, i32, i32, i32
  }
  func.func @transform_9(%arg0: i32, %arg1: i32) -> (i32, i32, i32, i32) {
    %c0_i32 = arith.constant 0 : i32
    %c0_i32_0 = arith.constant 0 : i32
    %c0_i32_1 = arith.constant 0 : i32
    %c0_i32_2 = arith.constant 0 : i32
    return %arg1, %c0_i32, %c0_i32_0, %c0_i32_1 : i32, i32, i32, i32
  }
  func.func @transform_10(%arg0: i32, %arg1: i32) -> (i32, i32, i32) {
    %c0_i32 = arith.constant 0 : i32
    %c0_i32_0 = arith.constant 0 : i32
    %c0_i32_1 = arith.constant 0 : i32
    return %arg1, %c0_i32, %c0_i32_0 : i32, i32, i32
  }
  func.func @transform_11(%arg0: i32, %arg1: i32) -> (i32, i32, i32) {
    %c0_i32 = arith.constant 0 : i32
    %c0_i32_0 = arith.constant 0 : i32
    %c0_i32_1 = arith.constant 0 : i32
    return %arg1, %c0_i32, %c0_i32_0 : i32, i32, i32
  }
  func.func @transform_12(%arg0: i32, %arg1: i32) -> (i32, i32, i32) {
    %c0_i32 = arith.constant 0 : i32
    %c0_i32_0 = arith.constant 0 : i32
    %c0_i32_1 = arith.constant 0 : i32
    return %arg1, %c0_i32, %c0_i32_0 : i32, i32, i32
  }
  func.func @transform_13(%arg0: i32, %arg1: i32) -> (i32, i32, i32) {
    %c0_i32 = arith.constant 0 : i32
    %c0_i32_0 = arith.constant 0 : i32
    %c0_i32_1 = arith.constant 0 : i32
    return %arg1, %c0_i32, %c0_i32_0 : i32, i32, i32
  }
  func.func @transform_14(%arg0: i32, %arg1: i32) -> (i32, i32, i32) {
    %c0_i32 = arith.constant 0 : i32
    %c0_i32_0 = arith.constant 0 : i32
    %c0_i32_1 = arith.constant 0 : i32
    return %arg1, %c0_i32, %c0_i32_0 : i32, i32, i32
  }
  func.func @transform_15(%arg0: i32, %arg1: i32) -> (i32, i32, i32) {
    %c0_i32 = arith.constant 0 : i32
    %c0_i32_0 = arith.constant 0 : i32
    %c0_i32_1 = arith.constant 0 : i32
    return %arg1, %c0_i32, %c0_i32_0 : i32, i32, i32
  }
  func.func @transform_16(%arg0: i32, %arg1: i32) -> (i32, i32, i32) {
    %c0_i32 = arith.constant 0 : i32
    %c0_i32_0 = arith.constant 0 : i32
    %c0_i32_1 = arith.constant 0 : i32
    return %arg1, %c0_i32, %c0_i32_0 : i32, i32, i32
  }
  func.func @transform_17(%arg0: i32, %arg1: i32) -> (i32, i32, i32) {
    %c0_i32 = arith.constant 0 : i32
    %c0_i32_0 = arith.constant 0 : i32
    %c0_i32_1 = arith.constant 0 : i32
    return %arg1, %c0_i32, %c0_i32_0 : i32, i32, i32
  }
  func.func @transform_18(%arg0: i32, %arg1: i32) -> (i32, i32, i32) {
    %c0_i32 = arith.constant 0 : i32
    %c0_i32_0 = arith.constant 0 : i32
    %c0_i32_1 = arith.constant 0 : i32
    return %arg1, %c0_i32, %c0_i32_0 : i32, i32, i32
  }
  func.func @transform_19(%arg0: i32, %arg1: i32) -> (i32, i32, i32) {
    %c0_i32 = arith.constant 0 : i32
    %c0_i32_0 = arith.constant 0 : i32
    %c0_i32_1 = arith.constant 0 : i32
    return %arg0, %c0_i32, %c0_i32_0 : i32, i32, i32
  }
}

</mosaic_0001>

<llo_original>
// kernel: tpu_custom_call.1
$region0: #{tpu_custom_call.1}
  #allocation0 [shape = 'u32[]', space=smem, size = 0x4, offset = 0x4, fixed_abs, tag = 'smem constant byte address 0x4 - core index']
  #allocation1 [shape = 'u32[72,128]{1,0:T(1,128)}', space=vmem, size = 0x9000, scoped, tag = 'internal scratch']
  #allocation2 [shape = 'f32[8,32]{1,0:T(8,128)}', space=vmem, size = 0x1000, scoped, tag = 'scratch operand']
  %s0 = inlined_call_operand.vmem [shape: f32[2,8,32], index: 0, kind: input, shape index: {}]
  %s1 = inlined_call_operand.vmem [shape: f32[8,8], index: 1, kind: input, shape index: {}]
  %s2 = inlined_call_operand.vmem [shape: f32[2,1,8], index: 2, kind: input, shape index: {}]
  %s3 = inlined_call_operand.vmem [shape: bf16[2,2,32,16], index: 3, kind: input, shape index: {}]
  %s4 = inlined_call_operand.vmem [shape: bf16[2,2,32,16], index: 4, kind: input, shape index: {}]
  %s5 = inlined_call_operand.vmem [shape: bf16[2,2,32,16], index: 5, kind: input, shape index: {}]
  %s6 = inlined_call_operand.vmem [shape: f32[2,2,1,16], index: 6, kind: input, shape index: {}]
  %s7 = inlined_call_operand.vmem [shape: f32[2,2,1,16], index: 7, kind: input, shape index: {}]
  %s8 = inlined_call_operand.vmem [shape: f32[2,2,1,16], index: 8, kind: input, shape index: {}]
  %s9 = inlined_call_operand.vmem [shape: bf16[2,2,16,32], index: 9, kind: input, shape index: {}]
  %s10 = inlined_call_operand.vmem [shape: f32[2,1,32], index: 10, kind: input, shape index: {}]
  %s11 = inlined_call_operand.vmem [shape: f32[2,1,32], index: 11, kind: input, shape index: {}]
  %s12 = inlined_call_operand.vmem [shape: f32[2,1,32], index: 12, kind: input, shape index: {}]
  %s13 = inlined_call_operand.vmem [shape: bf16[2,32,64], index: 13, kind: input, shape index: {}]
  %s14 = inlined_call_operand.vmem [shape: f32[2,1,64], index: 14, kind: input, shape index: {}]
  %s15 = inlined_call_operand.vmem [shape: bf16[2,64,32], index: 15, kind: input, shape index: {}]
  %s16 = inlined_call_operand.vmem [shape: f32[2,1,32], index: 16, kind: input, shape index: {}]
  %s17 = inlined_call_operand.vmem [shape: f32[2,1,32], index: 17, kind: input, shape index: {}]
  %s18 = inlined_call_operand.vmem [shape: f32[2,1,32], index: 18, kind: input, shape index: {}]
  %s19 = inlined_call_operand.hbm [shape: f32[2,8,32], index: 19, kind: output, shape index: {}]
  %s20 = sld [smem:[#allocation0]]
  $region117: #{tpu_custom_call.1} parent=0
    _
  %s22 = ssub.s32 1, %s20
  %s23 = scalar_select 0, %s22, %s20
  $region1: #{tpu_custom_call.1} parent=0
    #allocation3 [shape = 'u8[8192]{0}', space=vmem, size = 0x2000, scoped, tag = 'output window, operand 0']
    #allocation4 [shape = 's32[2]{0}', space=sflag, size = 0x8, scoped, tag = 'scoped memory for tpu_custom_call.1']
    %24 = vsyncpa [#allocation4], 0
    %s25 = scalar_lea.sflag [#allocation4], 1
    %26 = vsyncpa %s25, 0
    loop: start=0, step=1, limit=6
    $region2: #{tpu_custom_call.1} parent=1 // loop_pre_header
      _
    $region3: #{tpu_custom_call.1} parent=1 // loop_header
      %s28 = sphi 0, %s32
      %p29 = scmp.ge.s32.totalorder %s28, 6
      %s35 = sphi 0, %s47
      %s36 = sphi 0, %s43
      %s37 = sphi 0, %s35
      %s38 = sphi 0, %s36
      %s39 = sphi 0, %s37
      %s40 = sphi 0, %s38
      %s50 = sphi 0, %s52
      %s53 = sphi 0, %s50
      %s54 = sphi 0, %s53
      %s70 = sphi 0, %s54
      %s74 = sphi 0, %s74
      %s76 = sphi 0, %s74
      %s77 = sphi 0, %s76
      %s91 = sphi 0, %s77
      %s97 = sphi 0, %s99
      %s100 = sphi 0, %s97
      %s101 = sphi 0, %s100
      %s117 = sphi 0, %s101
      %s123 = sphi 0, %s125
      %s126 = sphi 0, %s123
      %s127 = sphi 0, %s126
      %s143 = sphi 0, %s127
      %s149 = sphi 0, %s151
      %s152 = sphi 0, %s149
      %s153 = sphi 0, %s152
      %s169 = sphi 0, %s153
      %s175 = sphi 0, %s177
      %s178 = sphi 0, %s175
      %s179 = sphi 0, %s178
      %s195 = sphi 0, %s179
      %s201 = sphi 0, %s203
      %s204 = sphi 0, %s201
      %s205 = sphi 0, %s204
      %s221 = sphi 0, %s205
      %s227 = sphi 0, %s229
      %s230 = sphi 0, %s227
      %s231 = sphi 0, %s230
      %s247 = sphi 0, %s231
      %s253 = sphi 0, %s255
      %s256 = sphi 0, %s253
      %s257 = sphi 0, %s256
      %s273 = sphi 0, %s257
      %s279 = sphi 0, %s281
      %s282 = sphi 0, %s279
      %s283 = sphi 0, %s282
      %s299 = sphi 0, %s283
      %s305 = sphi 0, %s307
      %s308 = sphi 0, %s305
      %s309 = sphi 0, %s308
      %s325 = sphi 0, %s309
      %s331 = sphi 0, %s333
      %s334 = sphi 0, %s331
      %s335 = sphi 0, %s334
      %s351 = sphi 0, %s335
      %s357 = sphi 0, %s359
      %s360 = sphi 0, %s357
      %s361 = sphi 0, %s360
      %s377 = sphi 0, %s361
      %s383 = sphi 0, %s385
      %s386 = sphi 0, %s383
      %s387 = sphi 0, %s386
      %s403 = sphi 0, %s387
      %s409 = sphi 0, %s411
      %s412 = sphi 0, %s409
      %s413 = sphi 0, %s412
      %s429 = sphi 0, %s413
      %s435 = sphi 0, %s437
      %s438 = sphi 0, %s435
      %s439 = sphi 0, %s438
      %s455 = sphi 0, %s439
      %s461 = sphi 0, %s463
      %s464 = sphi 0, %s461
      %s465 = sphi 0, %s464
      %s481 = sphi 0, %s465
      %s487 = sphi 0, %s489
      %s490 = sphi 0, %s487
      %s491 = sphi 0, %s490
      %s507 = sphi 0, %s491
      %s513 = sphi 0, %s515
      %s516 = sphi 0, %s513
      %s517 = sphi 0, %s516
      %s533 = sphi 0, %s517
      %s539 = sphi 0, %s541
      %s542 = sphi 0, %s539
      %s543 = sphi 0, %s542
      %s559 = sphi 0, %s543
    $region4: #{tpu_custom_call.1} parent=1 // loop_header_branch
      %31 = sbr.rel (%p29) target = $region8
    $region5: #{tpu_custom_call.1} parent=1 // loop_body
      %s33 = ssub.s32 %s28, 1
      %s34 = ssub.s32 %s28, 2
      %s41 = sadd.s32 1, %s36
      %p42 = scmp.ge.s32.totalorder %s41, 2
      %s43 = scalar_select %p42, 0, %s41
      %s44 = sadd.s32 1, %s35
      %s45 = scalar_select %p42, %s44, %s35
      %p46 = scmp.ge.s32.totalorder %s45, 2
      %s47 = scalar_select %p46, 0, %s45
      %s48 = ssub.s32 %s35, %s47
      %p49 = scmp.eq.s32.totalorder %s48, 0
      %s51 = sadd.s32 %s50, 1
      %s52 = scalar_select %p49, %s50, %s51
      %p55 = pneg %p49
      %p56 = scmp.eq.s32.totalorder %s28, 3
      %p57 = por %p55, %p56
      %p58 = scmp.ne.s32.totalorder %s50, %s53
      %p59 = scmp.eq.s32.totalorder %s28, 0
      %p60 = por %p58, %p59
      %p61 = scmp.ne.s32.totalorder %s50, %s53
      %p62 = scmp.eq.s32.totalorder %s33, 3
      %p63 = por %p61, %p62
      %p64 = scmp.ne.s32.totalorder %s53, %s54
      %p65 = scmp.eq.s32.totalorder %s33, 0
      %p66 = por %p64, %p65
      %p67 = scmp.ne.s32.totalorder %s53, %s54
      %p68 = scmp.eq.s32.totalorder %s34, 3
      %p69 = por %p67, %p68
      %p71 = scmp.ne.s32.totalorder %s54, %s70
      %p72 = scmp.eq.s32.totalorder %s34, 0
      %p73 = por %p71, %p72
      %s75 = sadd.s32 %s74, 1
      %p78 = scmp.eq.s32.totalorder %s28, 3
      %p79 = scmp.ne.s32.totalorder %s74, %s76
      %p80 = scmp.eq.s32.totalorder %s28, 0
      %p81 = por %p79, %p80
      %p82 = scmp.ne.s32.totalorder %s74, %s76
      %p83 = scmp.eq.s32.totalorder %s33, 3
      %p84 = por %p82, %p83
      %p85 = scmp.ne.s32.totalorder %s76, %s77
      %p86 = scmp.eq.s32.totalorder %s33, 0
      %p87 = por %p85, %p86
      %p88 = scmp.ne.s32.totalorder %s76, %s77
      %p89 = scmp.eq.s32.totalorder %s34, 3
      %p90 = por %p88, %p89
      %p92 = scmp.ne.s32.totalorder %s77, %s91
      %p93 = scmp.eq.s32.totalorder %s34, 0
      %p94 = por %p92, %p93
      %s95 = ssub.s32 %s35, %s47
      %p96 = scmp.eq.s32.totalorder %s95, 0
      %s98 = sadd.s32 %s97, 1
      %s99 = scalar_select %p96, %s97, %s98
      %p102 = pneg %p96
      %p103 = scmp.eq.s32.totalorder %s28, 3
      %p104 = por %p102, %p103
      %p105 = scmp.ne.s32.totalorder %s97, %s100
      %p106 = scmp.eq.s32.totalorder %s28, 0
      %p107 = por %p105, %p106
      %p108 = scmp.ne.s32.totalorder %s97, %s100
      %p109 = scmp.eq.s32.totalorder %s33, 3
      %p110 = por %p108, %p109
      %p111 = scmp.ne.s32.totalorder %s100, %s101
      %p112 = scmp.eq.s32.totalorder %s33, 0
      %p113 = por %p111, %p112
      %p114 = scmp.ne.s32.totalorder %s100, %s101
      %p115 = scmp.eq.s32.totalorder %s34, 3
      %p116 = por %p114, %p115
      %p118 = scmp.ne.s32.totalorder %s101, %s117
      %p119 = scmp.eq.s32.totalorder %s34, 0
      %p120 = por %p118, %p119
      %s121 = ssub.s32 %s36, %s43
      %p122 = scmp.eq.s32.totalorder %s121, 0
      %s124 = sadd.s32 %s123, 1
      %s125 = scalar_select %p122, %s123, %s124
      %p128 = pneg %p122
      %p129 = scmp.eq.s32.totalorder %s28, 3
      %p130 = por %p128, %p129
      %p131 = scmp.ne.s32.totalorder %s123, %s126
      %p132 = scmp.eq.s32.totalorder %s28, 0
      %p133 = por %p131, %p132
      %p134 = scmp.ne.s32.totalorder %s123, %s126
      %p135 = scmp.eq.s32.totalorder %s33, 3
      %p136 = por %p134, %p135
      %p137 = scmp.ne.s32.totalorder %s126, %s127
      %p138 = scmp.eq.s32.totalorder %s33, 0
      %p139 = por %p137, %p138
      %p140 = scmp.ne.s32.totalorder %s126, %s127
      %p141 = scmp.eq.s32.totalorder %s34, 3
      %p142 = por %p140, %p141
      %p144 = scmp.ne.s32.totalorder %s127, %s143
      %p145 = scmp.eq.s32.totalorder %s34, 0
      %p146 = por %p144, %p145
      %s147 = ssub.s32 %s36, %s43
      %p148 = scmp.eq.s32.totalorder %s147, 0
      %s150 = sadd.s32 %s149, 1
      %s151 = scalar_select %p148, %s149, %s150
      %p154 = pneg %p148
      %p155 = scmp.eq.s32.totalorder %s28, 3
      %p156 = por %p154, %p155
      %p157 = scmp.ne.s32.totalorder %s149, %s152
      %p158 = scmp.eq.s32.totalorder %s28, 0
      %p159 = por %p157, %p158
      %p160 = scmp.ne.s32.totalorder %s149, %s152
      %p161 = scmp.eq.s32.totalorder %s33, 3
      %p162 = por %p160, %p161
      %p163 = scmp.ne.s32.totalorder %s152, %s153
      %p164 = scmp.eq.s32.totalorder %s33, 0
      %p165 = por %p163, %p164
      %p166 = scmp.ne.s32.totalorder %s152, %s153
      %p167 = scmp.eq.s32.totalorder %s34, 3
      %p168 = por %p166, %p167
      %p170 = scmp.ne.s32.totalorder %s153, %s169
      %p171 = scmp.eq.s32.totalorder %s34, 0
      %p172 = por %p170, %p171
      %s173 = ssub.s32 %s36, %s43
      %p174 = scmp.eq.s32.totalorder %s173, 0
      %s176 = sadd.s32 %s175, 1
      %s177 = scalar_select %p174, %s175, %s176
      %p180 = pneg %p174
      %p181 = scmp.eq.s32.totalorder %s28, 3
      %p182 = por %p180, %p181
      %p183 = scmp.ne.s32.totalorder %s175, %s178
      %p184 = scmp.eq.s32.totalorder %s28, 0
      %p185 = por %p183, %p184
      %p186 = scmp.ne.s32.totalorder %s175, %s178
      %p187 = scmp.eq.s32.totalorder %s33, 3
      %p188 = por %p186, %p187
      %p189 = scmp.ne.s32.totalorder %s178, %s179
      %p190 = scmp.eq.s32.totalorder %s33, 0
      %p191 = por %p189, %p190
      %p192 = scmp.ne.s32.totalorder %s178, %s179
      %p193 = scmp.eq.s32.totalorder %s34, 3
      %p194 = por %p192, %p193
      %p196 = scmp.ne.s32.totalorder %s179, %s195
      %p197 = scmp.eq.s32.totalorder %s34, 0
      %p198 = por %p196, %p197
      %s199 = ssub.s32 %s36, %s43
      %p200 = scmp.eq.s32.totalorder %s199, 0
      %s202 = sadd.s32 %s201, 1
      %s203 = scalar_select %p200, %s201, %s202
      %p206 = pneg %p200
      %p207 = scmp.eq.s32.totalorder %s28, 3
      %p208 = por %p206, %p207
      %p209 = scmp.ne.s32.totalorder %s201, %s204
      %p210 = scmp.eq.s32.totalorder %s28, 0
      %p211 = por %p209, %p210
      %p212 = scmp.ne.s32.totalorder %s201, %s204
      %p213 = scmp.eq.s32.totalorder %s33, 3
      %p214 = por %p212, %p213
      %p215 = scmp.ne.s32.totalorder %s204, %s205
      %p216 = scmp.eq.s32.totalorder %s33, 0
      %p217 = por %p215, %p216
      %p218 = scmp.ne.s32.totalorder %s204, %s205
      %p219 = scmp.eq.s32.totalorder %s34, 3
      %p220 = por %p218, %p219
      %p222 = scmp.ne.s32.totalorder %s205, %s221
      %p223 = scmp.eq.s32.totalorder %s34, 0
      %p224 = por %p222, %p223
      %s225 = ssub.s32 %s36, %s43
      %p226 = scmp.eq.s32.totalorder %s225, 0
      %s228 = sadd.s32 %s227, 1
      %s229 = scalar_select %p226, %s227, %s228
      %p232 = pneg %p226
      %p233 = scmp.eq.s32.totalorder %s28, 3
      %p234 = por %p232, %p233
      %p235 = scmp.ne.s32.totalorder %s227, %s230
      %p236 = scmp.eq.s32.totalorder %s28, 0
      %p237 = por %p235, %p236
      %p238 = scmp.ne.s32.totalorder %s227, %s230
      %p239 = scmp.eq.s32.totalorder %s33, 3
      %p240 = por %p238, %p239
      %p241 = scmp.ne.s32.totalorder %s230, %s231
      %p242 = scmp.eq.s32.totalorder %s33, 0
      %p243 = por %p241, %p242
      %p244 = scmp.ne.s32.totalorder %s230, %s231
      %p245 = scmp.eq.s32.totalorder %s34, 3
      %p246 = por %p244, %p245
      %p248 = scmp.ne.s32.totalorder %s231, %s247
      %p249 = scmp.eq.s32.totalorder %s34, 0
      %p250 = por %p248, %p249
      %s251 = ssub.s32 %s36, %s43
      %p252 = scmp.eq.s32.totalorder %s251, 0
      %s254 = sadd.s32 %s253, 1
      %s255 = scalar_select %p252, %s253, %s254
      %p258 = pneg %p252
      %p259 = scmp.eq.s32.totalorder %s28, 3
      %p260 = por %p258, %p259
      %p261 = scmp.ne.s32.totalorder %s253, %s256
      %p262 = scmp.eq.s32.totalorder %s28, 0
      %p263 = por %p261, %p262
      %p264 = scmp.ne.s32.totalorder %s253, %s256
      %p265 = scmp.eq.s32.totalorder %s33, 3
      %p266 = por %p264, %p265
      %p267 = scmp.ne.s32.totalorder %s256, %s257
      %p268 = scmp.eq.s32.totalorder %s33, 0
      %p269 = por %p267, %p268
      %p270 = scmp.ne.s32.totalorder %s256, %s257
      %p271 = scmp.eq.s32.totalorder %s34, 3
      %p272 = por %p270, %p271
      %p274 = scmp.ne.s32.totalorder %s257, %s273
      %p275 = scmp.eq.s32.totalorder %s34, 0
      %p276 = por %p274, %p275
      %s277 = ssub.s32 %s36, %s43
      %p278 = scmp.eq.s32.totalorder %s277, 0
      %s280 = sadd.s32 %s279, 1
      %s281 = scalar_select %p278, %s279, %s280
      %p284 = pneg %p278
      %p285 = scmp.eq.s32.totalorder %s28, 3
      %p286 = por %p284, %p285
      %p287 = scmp.ne.s32.totalorder %s279, %s282
      %p288 = scmp.eq.s32.totalorder %s28, 0
      %p289 = por %p287, %p288
      %p290 = scmp.ne.s32.totalorder %s279, %s282
      %p291 = scmp.eq.s32.totalorder %s33, 3
      %p292 = por %p290, %p291
      %p293 = scmp.ne.s32.totalorder %s282, %s283
      %p294 = scmp.eq.s32.totalorder %s33, 0
      %p295 = por %p293, %p294
      %p296 = scmp.ne.s32.totalorder %s282, %s283
      %p297 = scmp.eq.s32.totalorder %s34, 3
      %p298 = por %p296, %p297
      %p300 = scmp.ne.s32.totalorder %s283, %s299
      %p301 = scmp.eq.s32.totalorder %s34, 0
      %p302 = por %p300, %p301
      %s303 = ssub.s32 %s36, %s43
      %p304 = scmp.eq.s32.totalorder %s303, 0
      %s306 = sadd.s32 %s305, 1
      %s307 = scalar_select %p304, %s305, %s306
      %p310 = pneg %p304
      %p311 = scmp.eq.s32.totalorder %s28, 3
      %p312 = por %p310, %p311
      %p313 = scmp.ne.s32.totalorder %s305, %s308
      %p314 = scmp.eq.s32.totalorder %s28, 0
      %p315 = por %p313, %p314
      %p316 = scmp.ne.s32.totalorder %s305, %s308
      %p317 = scmp.eq.s32.totalorder %s33, 3
      %p318 = por %p316, %p317
      %p319 = scmp.ne.s32.totalorder %s308, %s309
      %p320 = scmp.eq.s32.totalorder %s33, 0
      %p321 = por %p319, %p320
      %p322 = scmp.ne.s32.totalorder %s308, %s309
      %p323 = scmp.eq.s32.totalorder %s34, 3
      %p324 = por %p322, %p323
      %p326 = scmp.ne.s32.totalorder %s309, %s325
      %p327 = scmp.eq.s32.totalorder %s34, 0
      %p328 = por %p326, %p327
      %s329 = ssub.s32 %s36, %s43
      %p330 = scmp.eq.s32.totalorder %s329, 0
      %s332 = sadd.s32 %s331, 1
      %s333 = scalar_select %p330, %s331, %s332
      %p336 = pneg %p330
      %p337 = scmp.eq.s32.totalorder %s28, 3
      %p338 = por %p336, %p337
      %p339 = scmp.ne.s32.totalorder %s331, %s334
      %p340 = scmp.eq.s32.totalorder %s28, 0
      %p341 = por %p339, %p340
      %p342 = scmp.ne.s32.totalorder %s331, %s334
      %p343 = scmp.eq.s32.totalorder %s33, 3
      %p344 = por %p342, %p343
      %p345 = scmp.ne.s32.totalorder %s334, %s335
      %p346 = scmp.eq.s32.totalorder %s33, 0
      %p347 = por %p345, %p346
      %p348 = scmp.ne.s32.totalorder %s334, %s335
      %p349 = scmp.eq.s32.totalorder %s34, 3
      %p350 = por %p348, %p349
      %p352 = scmp.ne.s32.totalorder %s335, %s351
      %p353 = scmp.eq.s32.totalorder %s34, 0
      %p354 = por %p352, %p353
      %s355 = ssub.s32 %s36, %s43
      %p356 = scmp.eq.s32.totalorder %s355, 0
      %s358 = sadd.s32 %s357, 1
      %s359 = scalar_select %p356, %s357, %s358
      %p362 = pneg %p356
      %p363 = scmp.eq.s32.totalorder %s28, 3
      %p364 = por %p362, %p363
      %p365 = scmp.ne.s32.totalorder %s357, %s360
      %p366 = scmp.eq.s32.totalorder %s28, 0
      %p367 = por %p365, %p366
      %p368 = scmp.ne.s32.totalorder %s357, %s360
      %p369 = scmp.eq.s32.totalorder %s33, 3
      %p370 = por %p368, %p369
      %p371 = scmp.ne.s32.totalorder %s360, %s361
      %p372 = scmp.eq.s32.totalorder %s33, 0
      %p373 = por %p371, %p372
      %p374 = scmp.ne.s32.totalorder %s360, %s361
      %p375 = scmp.eq.s32.totalorder %s34, 3
      %p376 = por %p374, %p375
      %p378 = scmp.ne.s32.totalorder %s361, %s377
      %p379 = scmp.eq.s32.totalorder %s34, 0
      %p380 = por %p378, %p379
      %s381 = ssub.s32 %s36, %s43
      %p382 = scmp.eq.s32.totalorder %s381, 0
      %s384 = sadd.s32 %s383, 1
      %s385 = scalar_select %p382, %s383, %s384
      %p388 = pneg %p382
      %p389 = scmp.eq.s32.totalorder %s28, 3
      %p390 = por %p388, %p389
      %p391 = scmp.ne.s32.totalorder %s383, %s386
      %p392 = scmp.eq.s32.totalorder %s28, 0
      %p393 = por %p391, %p392
      %p394 = scmp.ne.s32.totalorder %s383, %s386
      %p395 = scmp.eq.s32.totalorder %s33, 3
      %p396 = por %p394, %p395
      %p397 = scmp.ne.s32.totalorder %s386, %s387
      %p398 = scmp.eq.s32.totalorder %s33, 0
      %p399 = por %p397, %p398
      %p400 = scmp.ne.s32.totalorder %s386, %s387
      %p401 = scmp.eq.s32.totalorder %s34, 3
      %p402 = por %p400, %p401
      %p404 = scmp.ne.s32.totalorder %s387, %s403
      %p405 = scmp.eq.s32.totalorder %s34, 0
      %p406 = por %p404, %p405
      %s407 = ssub.s32 %s36, %s43
      %p408 = scmp.eq.s32.totalorder %s407, 0
      %s410 = sadd.s32 %s409, 1
      %s411 = scalar_select %p408, %s409, %s410
      %p414 = pneg %p408
      %p415 = scmp.eq.s32.totalorder %s28, 3
      %p416 = por %p414, %p415
      %p417 = scmp.ne.s32.totalorder %s409, %s412
      %p418 = scmp.eq.s32.totalorder %s28, 0
      %p419 = por %p417, %p418
      %p420 = scmp.ne.s32.totalorder %s409, %s412
      %p421 = scmp.eq.s32.totalorder %s33, 3
      %p422 = por %p420, %p421
      %p423 = scmp.ne.s32.totalorder %s412, %s413
      %p424 = scmp.eq.s32.totalorder %s33, 0
      %p425 = por %p423, %p424
      %p426 = scmp.ne.s32.totalorder %s412, %s413
      %p427 = scmp.eq.s32.totalorder %s34, 3
      %p428 = por %p426, %p427
      %p430 = scmp.ne.s32.totalorder %s413, %s429
      %p431 = scmp.eq.s32.totalorder %s34, 0
      %p432 = por %p430, %p431
      %s433 = ssub.s32 %s36, %s43
      %p434 = scmp.eq.s32.totalorder %s433, 0
      %s436 = sadd.s32 %s435, 1
      %s437 = scalar_select %p434, %s435, %s436
      %p440 = pneg %p434
      %p441 = scmp.eq.s32.totalorder %s28, 3
      %p442 = por %p440, %p441
      %p443 = scmp.ne.s32.totalorder %s435, %s438
      %p444 = scmp.eq.s32.totalorder %s28, 0
      %p445 = por %p443, %p444
      %p446 = scmp.ne.s32.totalorder %s435, %s438
      %p447 = scmp.eq.s32.totalorder %s33, 3
      %p448 = por %p446, %p447
      %p449 = scmp.ne.s32.totalorder %s438, %s439
      %p450 = scmp.eq.s32.totalorder %s33, 0
      %p451 = por %p449, %p450
      %p452 = scmp.ne.s32.totalorder %s438, %s439
      %p453 = scmp.eq.s32.totalorder %s34, 3
      %p454 = por %p452, %p453
      %p456 = scmp.ne.s32.totalorder %s439, %s455
      %p457 = scmp.eq.s32.totalorder %s34, 0
      %p458 = por %p456, %p457
      %s459 = ssub.s32 %s36, %s43
      %p460 = scmp.eq.s32.totalorder %s459, 0
      %s462 = sadd.s32 %s461, 1
      %s463 = scalar_select %p460, %s461, %s462
      %p466 = pneg %p460
      %p467 = scmp.eq.s32.totalorder %s28, 3
      %p468 = por %p466, %p467
      %p469 = scmp.ne.s32.totalorder %s461, %s464
      %p470 = scmp.eq.s32.totalorder %s28, 0
      %p471 = por %p469, %p470
      %p472 = scmp.ne.s32.totalorder %s461, %s464
      %p473 = scmp.eq.s32.totalorder %s33, 3
      %p474 = por %p472, %p473
      %p475 = scmp.ne.s32.totalorder %s464, %s465
      %p476 = scmp.eq.s32.totalorder %s33, 0
      %p477 = por %p475, %p476
      %p478 = scmp.ne.s32.totalorder %s464, %s465
      %p479 = scmp.eq.s32.totalorder %s34, 3
      %p480 = por %p478, %p479
      %p482 = scmp.ne.s32.totalorder %s465, %s481
      %p483 = scmp.eq.s32.totalorder %s34, 0
      %p484 = por %p482, %p483
      %s485 = ssub.s32 %s36, %s43
      %p486 = scmp.eq.s32.totalorder %s485, 0
      %s488 = sadd.s32 %s487, 1
      %s489 = scalar_select %p486, %s487, %s488
      %p492 = pneg %p486
      %p493 = scmp.eq.s32.totalorder %s28, 3
      %p494 = por %p492, %p493
      %p495 = scmp.ne.s32.totalorder %s487, %s490
      %p496 = scmp.eq.s32.totalorder %s28, 0
      %p497 = por %p495, %p496
      %p498 = scmp.ne.s32.totalorder %s487, %s490
      %p499 = scmp.eq.s32.totalorder %s33, 3
      %p500 = por %p498, %p499
      %p501 = scmp.ne.s32.totalorder %s490, %s491
      %p502 = scmp.eq.s32.totalorder %s33, 0
      %p503 = por %p501, %p502
      %p504 = scmp.ne.s32.totalorder %s490, %s491
      %p505 = scmp.eq.s32.totalorder %s34, 3
      %p506 = por %p504, %p505
      %p508 = scmp.ne.s32.totalorder %s491, %s507
      %p509 = scmp.eq.s32.totalorder %s34, 0
      %p510 = por %p508, %p509
      %s511 = ssub.s32 %s36, %s43
      %p512 = scmp.eq.s32.totalorder %s511, 0
      %s514 = sadd.s32 %s513, 1
      %s515 = scalar_select %p512, %s513, %s514
      %p518 = pneg %p512
      %p519 = scmp.eq.s32.totalorder %s28, 3
      %p520 = por %p518, %p519
      %p521 = scmp.ne.s32.totalorder %s513, %s516
      %p522 = scmp.eq.s32.totalorder %s28, 0
      %p523 = por %p521, %p522
      %p524 = scmp.ne.s32.totalorder %s513, %s516
      %p525 = scmp.eq.s32.totalorder %s33, 3
      %p526 = por %p524, %p525
      %p527 = scmp.ne.s32.totalorder %s516, %s517
      %p528 = scmp.eq.s32.totalorder %s33, 0
      %p529 = por %p527, %p528
      %p530 = scmp.ne.s32.totalorder %s516, %s517
      %p531 = scmp.eq.s32.totalorder %s34, 3
      %p532 = por %p530, %p531
      %p534 = scmp.ne.s32.totalorder %s517, %s533
      %p535 = scmp.eq.s32.totalorder %s34, 0
      %p536 = por %p534, %p535
      %s537 = ssub.s32 %s35, %s47
      %p538 = scmp.eq.s32.totalorder %s537, 0
      %s540 = sadd.s32 %s539, 1
      %s541 = scalar_select %p538, %s539, %s540
      %p544 = pneg %p538
      %p545 = scmp.eq.s32.totalorder %s28, 3
      %p546 = por %p544, %p545
      %p547 = scmp.ne.s32.totalorder %s539, %s542
      %p548 = scmp.eq.s32.totalorder %s28, 0
      %p549 = por %p547, %p548
      %p550 = scmp.ne.s32.totalorder %s539, %s542
      %p551 = scmp.eq.s32.totalorder %s33, 3
      %p552 = por %p550, %p551
      %p553 = scmp.ne.s32.totalorder %s542, %s543
      %p554 = scmp.eq.s32.totalorder %s33, 0
      %p555 = por %p553, %p554
      %p556 = scmp.ne.s32.totalorder %s542, %s543
      %p557 = scmp.eq.s32.totalorder %s34, 3
      %p558 = por %p556, %p557
      %p560 = scmp.ne.s32.totalorder %s543, %s559
      %p561 = scmp.eq.s32.totalorder %s34, 0
      %p562 = por %p560, %p561
      %p563 = scmp.le.s32.totalorder 1, %s28
      %p564 = scmp.lt.s32.totalorder %s28, 5
      %p565 = pnand %p563, %p564
      %p566 = pneg %p565
      // Predicated region
      $region9: #{tpu_custom_call.1} parent=5 // pred_check
        _
      $region10: #{tpu_custom_call.1} parent=5 // pred_check_branch
        %568 = sbr.rel (%p565) target = $region12
      $region11: #{tpu_custom_call.1} parent=5 // pred_region
        %s569 = ssub.s32 %s28, 1
        // Predicated region
        $region13: #{tpu_custom_call.1} parent=11 // pred_check
          %p570 = pneg %p87
        $region14: #{tpu_custom_call.1} parent=11 // pred_check_branch
          %572 = sbr.rel (%p570) target = $region16
        $region15: #{tpu_custom_call.1} parent=11 // pred_region
          _
        $region16: #{tpu_custom_call.1} parent=11 // pred_fallthru
          _
      $region12: #{tpu_custom_call.1} parent=5 // pred_fallthru
        _
      %p573 = scmp.lt.s32.totalorder %s28, 4
      // Predicated region
      $region17: #{tpu_custom_call.1} parent=5 // pred_check
        %p574 = pneg %p573
      $region18: #{tpu_custom_call.1} parent=5 // pred_check_branch
        %576 = sbr.rel (%p574) target = $region20
      $region19: #{tpu_custom_call.1} parent=5 // pred_region
        // Predicated region
        $region21: #{tpu_custom_call.1} parent=19 // pred_check
          %p577 = pneg %p60
        $region22: #{tpu_custom_call.1} parent=19 // pred_check_branch
          %579 = sbr.rel (%p577) target = $region24
        $region23: #{tpu_custom_call.1} parent=19 // pred_region
          %p580 = scmp.lt.s32.totalorder %s35, 1
          %s581 = scalar_select %p580, %s35, 1
          %s582 = smul.addr %s581, 8
          %s583 = scalar_lea.vmem %s0, %s582
        $region24: #{tpu_custom_call.1} parent=19 // pred_fallthru
          _
        // Predicated region
        $region25: #{tpu_custom_call.1} parent=19 // pred_check
          %p584 = pneg %p107
        $region26: #{tpu_custom_call.1} parent=19 // pred_check_branch
          %586 = sbr.rel (%p584) target = $region28
        $region27: #{tpu_custom_call.1} parent=19 // pred_region
          %p587 = scmp.lt.s32.totalorder %s35, 1
          %s588 = scalar_select %p587, %s35, 1
          %s589 = scalar_lea.vmem %s2, %s588
        $region28: #{tpu_custom_call.1} parent=19 // pred_fallthru
          _
        // Predicated region
        $region29: #{tpu_custom_call.1} parent=19 // pred_check
          %p590 = pneg %p133
        $region30: #{tpu_custom_call.1} parent=19 // pred_check_branch
          %592 = sbr.rel (%p590) target = $region32
        $region31: #{tpu_custom_call.1} parent=19 // pred_region
          %p593 = scmp.lt.s32.totalorder %s36, 1
          %s594 = scalar_select %p593, %s36, 1
          %s595 = smul.addr %s594, 8
          %s596 = smul.addr %s595, 4
          %s597 = scalar_lea.vmem %s3, %s596
        $region32: #{tpu_custom_call.1} parent=19 // pred_fallthru
          _
        // Predicated region
        $region33: #{tpu_custom_call.1} parent=19 // pred_check
          %p598 = pneg %p159
        $region34: #{tpu_custom_call.1} parent=19 // pred_check_branch
          %600 = sbr.rel (%p598) target = $region36
        $region35: #{tpu_custom_call.1} parent=19 // pred_region
          %p601 = scmp.lt.s32.totalorder %s36, 1
          %s602 = scalar_select %p601, %s36, 1
          %s603 = smul.addr %s602, 8
          %s604 = smul.addr %s603, 4
          %s605 = scalar_lea.vmem %s4, %s604
        $region36: #{tpu_custom_call.1} parent=19 // pred_fallthru
          _
        // Predicated region
        $region37: #{tpu_custom_call.1} parent=19 // pred_check
          %p606 = pneg %p185
        $region38: #{tpu_custom_call.1} parent=19 // pred_check_branch
          %608 = sbr.rel (%p606) target = $region40
        $region39: #{tpu_custom_call.1} parent=19 // pred_region
          %p609 = scmp.lt.s32.totalorder %s36, 1
          %s610 = scalar_select %p609, %s36, 1
          %s611 = smul.addr %s610, 8
          %s612 = smul.addr %s611, 4
          %s613 = scalar_lea.vmem %s5, %s612
        $region40: #{tpu_custom_call.1} parent=19 // pred_fallthru
          _
        // Predicated region
        $region41: #{tpu_custom_call.1} parent=19 // pred_check
          %p614 = pneg %p211
        $region42: #{tpu_custom_call.1} parent=19 // pred_check_branch
          %616 = sbr.rel (%p614) target = $region44
        $region43: #{tpu_custom_call.1} parent=19 // pred_region
          %p617 = scmp.lt.s32.totalorder %s36, 1
          %s618 = scalar_select %p617, %s36, 1
          %s619 = smul.addr %s618, 2
          %s620 = scalar_lea.vmem %s6, %s619
        $region44: #{tpu_custom_call.1} parent=19 // pred_fallthru
          _
        // Predicated region
        $region45: #{tpu_custom_call.1} parent=19 // pred_check
          %p621 = pneg %p237
        $region46: #{tpu_custom_call.1} parent=19 // pred_check_branch
          %623 = sbr.rel (%p621) target = $region48
        $region47: #{tpu_custom_call.1} parent=19 // pred_region
          %p624 = scmp.lt.s32.totalorder %s36, 1
          %s625 = scalar_select %p624, %s36, 1
          %s626 = smul.addr %s625, 2
          %s627 = scalar_lea.vmem %s7, %s626
        $region48: #{tpu_custom_call.1} parent=19 // pred_fallthru
          _
        // Predicated region
        $region49: #{tpu_custom_call.1} parent=19 // pred_check
          %p628 = pneg %p263
        $region50: #{tpu_custom_call.1} parent=19 // pred_check_branch
          %630 = sbr.rel (%p628) target = $region52
        $region51: #{tpu_custom_call.1} parent=19 // pred_region
          %p631 = scmp.lt.s32.totalorder %s36, 1
          %s632 = scalar_select %p631, %s36, 1
          %s633 = smul.addr %s632, 2
          %s634 = scalar_lea.vmem %s8, %s633
        $region52: #{tpu_custom_call.1} parent=19 // pred_fallthru
          _
        // Predicated region
        $region53: #{tpu_custom_call.1} parent=19 // pred_check
          %p635 = pneg %p289
        $region54: #{tpu_custom_call.1} parent=19 // pred_check_branch
          %637 = sbr.rel (%p635) target = $region56
        $region55: #{tpu_custom_call.1} parent=19 // pred_region
          %p638 = scmp.lt.s32.totalorder %s36, 1
          %s639 = scalar_select %p638, %s36, 1
          %s640 = smul.addr %s639, 4
          %s641 = smul.addr %s640, 4
          %s642 = scalar_lea.vmem %s9, %s641
        $region56: #{tpu_custom_call.1} parent=19 // pred_fallthru
          _
        // Predicated region
        $region57: #{tpu_custom_call.1} parent=19 // pred_check
          %p643 = pneg %p315
        $region58: #{tpu_custom_call.1} parent=19 // pred_check_branch
          %645 = sbr.rel (%p643) target = $region60
        $region59: #{tpu_custom_call.1} parent=19 // pred_region
          %p646 = scmp.lt.s32.totalorder %s36, 1
          %s647 = scalar_select %p646, %s36, 1
          %s648 = scalar_lea.vmem %s10, %s647
        $region60: #{tpu_custom_call.1} parent=19 // pred_fallthru
          _
        // Predicated region
        $region61: #{tpu_custom_call.1} parent=19 // pred_check
          %p649 = pneg %p341
        $region62: #{tpu_custom_call.1} parent=19 // pred_check_branch
          %651 = sbr.rel (%p649) target = $region64
        $region63: #{tpu_custom_call.1} parent=19 // pred_region
          %p652 = scmp.lt.s32.totalorder %s36, 1
          %s653 = scalar_select %p652, %s36, 1
          %s654 = scalar_lea.vmem %s11, %s653
        $region64: #{tpu_custom_call.1} parent=19 // pred_fallthru
          _
        // Predicated region
        $region65: #{tpu_custom_call.1} parent=19 // pred_check
          %p655 = pneg %p367
        $region66: #{tpu_custom_call.1} parent=19 // pred_check_branch
          %657 = sbr.rel (%p655) target = $region68
        $region67: #{tpu_custom_call.1} parent=19 // pred_region
          %p658 = scmp.lt.s32.totalorder %s36, 1
          %s659 = scalar_select %p658, %s36, 1
          %s660 = scalar_lea.vmem %s12, %s659
        $region68: #{tpu_custom_call.1} parent=19 // pred_fallthru
          _
        // Predicated region
        $region69: #{tpu_custom_call.1} parent=19 // pred_check
          %p661 = pneg %p393
        $region70: #{tpu_custom_call.1} parent=19 // pred_check_branch
          %663 = sbr.rel (%p661) target = $region72
        $region71: #{tpu_custom_call.1} parent=19 // pred_region
          %p664 = scmp.lt.s32.totalorder %s36, 1
          %s665 = scalar_select %p664, %s36, 1
          %s666 = smul.addr %s665, 4
          %s667 = smul.addr %s666, 4
          %s668 = scalar_lea.vmem %s13, %s667
        $region72: #{tpu_custom_call.1} parent=19 // pred_fallthru
          _
        // Predicated region
        $region73: #{tpu_custom_call.1} parent=19 // pred_check
          %p669 = pneg %p419
        $region74: #{tpu_custom_call.1} parent=19 // pred_check_branch
          %671 = sbr.rel (%p669) target = $region76
        $region75: #{tpu_custom_call.1} parent=19 // pred_region
          %p672 = scmp.lt.s32.totalorder %s36, 1
          %s673 = scalar_select %p672, %s36, 1
          %s674 = scalar_lea.vmem %s14, %s673
        $region76: #{tpu_custom_call.1} parent=19 // pred_fallthru
          _
        // Predicated region
        $region77: #{tpu_custom_call.1} parent=19 // pred_check
          %p675 = pneg %p445
        $region78: #{tpu_custom_call.1} parent=19 // pred_check_branch
          %677 = sbr.rel (%p675) target = $region80
        $region79: #{tpu_custom_call.1} parent=19 // pred_region
          %p678 = scmp.lt.s32.totalorder %s36, 1
          %s679 = scalar_select %p678, %s36, 1
          %s680 = smul.addr %s679, 8
          %s681 = smul.addr %s680, 4
          %s682 = scalar_lea.vmem %s15, %s681
        $region80: #{tpu_custom_call.1} parent=19 // pred_fallthru
          _
        // Predicated region
        $region81: #{tpu_custom_call.1} parent=19 // pred_check
          %p683 = pneg %p471
        $region82: #{tpu_custom_call.1} parent=19 // pred_check_branch
          %685 = sbr.rel (%p683) target = $region84
        $region83: #{tpu_custom_call.1} parent=19 // pred_region
          %p686 = scmp.lt.s32.totalorder %s36, 1
          %s687 = scalar_select %p686, %s36, 1
          %s688 = scalar_lea.vmem %s16, %s687
        $region84: #{tpu_custom_call.1} parent=19 // pred_fallthru
          _
        // Predicated region
        $region85: #{tpu_custom_call.1} parent=19 // pred_check
          %p689 = pneg %p497
        $region86: #{tpu_custom_call.1} parent=19 // pred_check_branch
          %691 = sbr.rel (%p689) target = $region88
        $region87: #{tpu_custom_call.1} parent=19 // pred_region
          %p692 = scmp.lt.s32.totalorder %s36, 1
          %s693 = scalar_select %p692, %s36, 1
          %s694 = scalar_lea.vmem %s17, %s693
        $region88: #{tpu_custom_call.1} parent=19 // pred_fallthru
          _
        // Predicated region
        $region89: #{tpu_custom_call.1} parent=19 // pred_check
          %p695 = pneg %p523
        $region90: #{tpu_custom_call.1} parent=19 // pred_check_branch
          %697 = sbr.rel (%p695) target = $region92
        $region91: #{tpu_custom_call.1} parent=19 // pred_region
          %p698 = scmp.lt.s32.totalorder %s36, 1
          %s699 = scalar_select %p698, %s36, 1
          %s700 = scalar_lea.vmem %s18, %s699
        $region92: #{tpu_custom_call.1} parent=19 // pred_fallthru
          _
      $region20: #{tpu_custom_call.1} parent=5 // pred_fallthru
        _
      %p701 = scmp.le.s32.totalorder 1, %s28
      %p702 = scmp.lt.s32.totalorder %s28, 5
      %p703 = pnand %p701, %p702
      %p704 = pneg %p703
      // Predicated region
      $region93: #{tpu_custom_call.1} parent=5 // pred_check
        _
      $region94: #{tpu_custom_call.1} parent=5 // pred_check_branch
        %706 = sbr.rel (%p703) target = $region96
      $region95: #{tpu_custom_call.1} parent=5 // pred_region
        %s707 = ssub.s32 %s28, 1
        %p708 = scmp.lt.s32.totalorder %s37, 1
        %s709 = scalar_select %p708, %s37, 1
        %s710 = smul.addr %s709, 8
        %s711 = scalar_lea.vmem %s0, %s710
        %p712 = pneg %p66
        %p713 = pneg %p63
        %p714 = pneg %p87
        %p715 = pneg %p84
        %p716 = scmp.lt.s32.totalorder %s37, 1
        %s717 = scalar_select %p716, %s37, 1
        %s718 = scalar_lea.vmem %s2, %s717
        %p719 = pneg %p113
        %p720 = pneg %p110
        %p721 = scmp.lt.s32.totalorder %s38, 1
        %s722 = scalar_select %p721, %s38, 1
        %s723 = smul.addr %s722, 8
        %s724 = smul.addr %s723, 4
        %s725 = scalar_lea.vmem %s3, %s724
        %p726 = pneg %p139
        %p727 = pneg %p136
        %p728 = scmp.lt.s32.totalorder %s38, 1
        %s729 = scalar_select %p728, %s38, 1
        %s730 = smul.addr %s729, 8
        %s731 = smul.addr %s730, 4
        %s732 = scalar_lea.vmem %s4, %s731
        %p733 = pneg %p165
        %p734 = pneg %p162
        %p735 = scmp.lt.s32.totalorder %s38, 1
        %s736 = scalar_select %p735, %s38, 1
        %s737 = smul.addr %s736, 8
        %s738 = smul.addr %s737, 4
        %s739 = scalar_lea.vmem %s5, %s738
        %p740 = pneg %p191
        %p741 = pneg %p188
        %p742 = scmp.lt.s32.totalorder %s38, 1
        %s743 = scalar_select %p742, %s38, 1
        %s744 = smul.addr %s743, 2
        %s745 = scalar_lea.vmem %s6, %s744
        %p746 = pneg %p217
        %p747 = pneg %p214
        %p748 = scmp.lt.s32.totalorder %s38, 1
        %s749 = scalar_select %p748, %s38, 1
        %s750 = smul.addr %s749, 2
        %s751 = scalar_lea.vmem %s7, %s750
        %p752 = pneg %p243
        %p753 = pneg %p240
        %p754 = scmp.lt.s32.totalorder %s38, 1
        %s755 = scalar_select %p754, %s38, 1
        %s756 = smul.addr %s755, 2
        %s757 = scalar_lea.vmem %s8, %s756
        %p758 = pneg %p269
        %p759 = pneg %p266
        %p760 = scmp.lt.s32.totalorder %s38, 1
        %s761 = scalar_select %p760, %s38, 1
        %s762 = smul.addr %s761, 4
        %s763 = smul.addr %s762, 4
        %s764 = scalar_lea.vmem %s9, %s763
        %p765 = pneg %p295
        %p766 = pneg %p292
        %p767 = scmp.lt.s32.totalorder %s38, 1
        %s768 = scalar_select %p767, %s38, 1
        %s769 = scalar_lea.vmem %s10, %s768
        %p770 = pneg %p321
        %p771 = pneg %p318
        %p772 = scmp.lt.s32.totalorder %s38, 1
        %s773 = scalar_select %p772, %s38, 1
        %s774 = scalar_lea.vmem %s11, %s773
        %p775 = pneg %p347
        %p776 = pneg %p344
        %p777 = scmp.lt.s32.totalorder %s38, 1
        %s778 = scalar_select %p777, %s38, 1
        %s779 = scalar_lea.vmem %s12, %s778
        %p780 = pneg %p373
        %p781 = pneg %p370
        %p782 = scmp.lt.s32.totalorder %s38, 1
        %s783 = scalar_select %p782, %s38, 1
        %s784 = smul.addr %s783, 4
        %s785 = smul.addr %s784, 4
        %s786 = scalar_lea.vmem %s13, %s785
        %p787 = pneg %p399
        %p788 = pneg %p396
        %p789 = scmp.lt.s32.totalorder %s38, 1
        %s790 = scalar_select %p789, %s38, 1
        %s791 = scalar_lea.vmem %s14, %s790
        %p792 = pneg %p425
        %p793 = pneg %p422
        %p794 = scmp.lt.s32.totalorder %s38, 1
        %s795 = scalar_select %p794, %s38, 1
        %s796 = smul.addr %s795, 8
        %s797 = smul.addr %s796, 4
        %s798 = scalar_lea.vmem %s15, %s797
        %p799 = pneg %p451
        %p800 = pneg %p448
        %p801 = scmp.lt.s32.totalorder %s38, 1
        %s802 = scalar_select %p801, %s38, 1
        %s803 = scalar_lea.vmem %s16, %s802
        %p804 = pneg %p477
        %p805 = pneg %p474
        %p806 = scmp.lt.s32.totalorder %s38, 1
        %s807 = scalar_select %p806, %s38, 1
        %s808 = scalar_lea.vmem %s17, %s807
        %p809 = pneg %p503
        %p810 = pneg %p500
        %p811 = scmp.lt.s32.totalorder %s38, 1
        %s812 = scalar_select %p811, %s38, 1
        %s813 = scalar_lea.vmem %s18, %s812
        %p814 = pneg %p529
        %p815 = pneg %p526
        %p816 = pneg %p555
        %p817 = pneg %p552
        %s818 = sand.u32 %s542, 1
        %s819 = scalar_lea.sflag [#allocation4], %s818
        %s820 = sand.u32 %s542, 1
        %s821 = smul.addr %s820, 8
        %s822 = scalar_lea.vmem [#allocation3], %s821
        %p823 = scmp.lt.s32.totalorder %s37, 1
        %s824 = scalar_select %p823, %s37, 1
        %s825 = smul.addr %s824, 8
        %s826 = scalar_lea.vmem %s0, %s825
        %p827 = scmp.lt.s32.totalorder %s37, 1
        %s828 = scalar_select %p827, %s37, 1
        %s829 = scalar_lea.vmem %s2, %s828
        %p830 = scmp.lt.s32.totalorder %s38, 1
        %s831 = scalar_select %p830, %s38, 1
        %s832 = smul.addr %s831, 8
        %s833 = smul.addr %s832, 4
        %s834 = scalar_lea.vmem %s3, %s833
        %p835 = scmp.lt.s32.totalorder %s38, 1
        %s836 = scalar_select %p835, %s38, 1
        %s837 = smul.addr %s836, 8
        %s838 = smul.addr %s837, 4
        %s839 = scalar_lea.vmem %s4, %s838
        %p840 = scmp.lt.s32.totalorder %s38, 1
        %s841 = scalar_select %p840, %s38, 1
        %s842 = smul.addr %s841, 8
        %s843 = smul.addr %s842, 4
        %s844 = scalar_lea.vmem %s5, %s843
        %p845 = scmp.lt.s32.totalorder %s38, 1
        %s846 = scalar_select %p845, %s38, 1
        %s847 = smul.addr %s846, 2
        %s848 = scalar_lea.vmem %s6, %s847
        %p849 = scmp.lt.s32.totalorder %s38, 1
        %s850 = scalar_select %p849, %s38, 1
        %s851 = smul.addr %s850, 2
        %s852 = scalar_lea.vmem %s7, %s851
        %p853 = scmp.lt.s32.totalorder %s38, 1
        %s854 = scalar_select %p853, %s38, 1
        %s855 = smul.addr %s854, 2
        %s856 = scalar_lea.vmem %s8, %s855
        %p857 = scmp.lt.s32.totalorder %s38, 1
        %s858 = scalar_select %p857, %s38, 1
        %s859 = smul.addr %s858, 4
        %s860 = smul.addr %s859, 4
        %s861 = scalar_lea.vmem %s9, %s860
        %p862 = scmp.lt.s32.totalorder %s38, 1
        %s863 = scalar_select %p862, %s38, 1
        %s864 = scalar_lea.vmem %s10, %s863
        %p865 = scmp.lt.s32.totalorder %s38, 1
        %s866 = scalar_select %p865, %s38, 1
        %s867 = scalar_lea.vmem %s11, %s866
        %p868 = scmp.lt.s32.totalorder %s38, 1
        %s869 = scalar_select %p868, %s38, 1
        %s870 = scalar_lea.vmem %s12, %s869
        %p871 = scmp.lt.s32.totalorder %s38, 1
        %s872 = scalar_select %p871, %s38, 1
        %s873 = smul.addr %s872, 4
        %s874 = smul.addr %s873, 4
        %s875 = scalar_lea.vmem %s13, %s874
        %p876 = scmp.lt.s32.totalorder %s38, 1
        %s877 = scalar_select %p876, %s38, 1
        %s878 = scalar_lea.vmem %s14, %s877
        %p879 = scmp.lt.s32.totalorder %s38, 1
        %s880 = scalar_select %p879, %s38, 1
        %s881 = smul.addr %s880, 8
        %s882 = smul.addr %s881, 4
        %s883 = scalar_lea.vmem %s15, %s882
        %p884 = scmp.lt.s32.totalorder %s38, 1
        %s885 = scalar_select %p884, %s38, 1
        %s886 = scalar_lea.vmem %s16, %s885
        %p887 = scmp.lt.s32.totalorder %s38, 1
        %s888 = scalar_select %p887, %s38, 1
        %s889 = scalar_lea.vmem %s17, %s888
        %p890 = scmp.lt.s32.totalorder %s38, 1
        %s891 = scalar_select %p890, %s38, 1
        %s892 = scalar_lea.vmem %s18, %s891
        %p894 = scmp.eq.s32.totalorder %s38, 0
        // Predicated region
        $region97: #{tpu_custom_call.1} parent=95 // pred_check
          %p895 = pneg %p894
        $region98: #{tpu_custom_call.1} parent=95 // pred_check_branch
          %897 = sbr.rel (%p895) target = $region100
        $region99: #{tpu_custom_call.1} parent=95 // pred_region
          %v898 = vld [vmem:[%s826] sm:$0xff]
          %vm899 = vcmask 261120
          %900 = vst.msk [vmem:[#allocation2] sm:$0xff] %vm899, %v898
        $region100: #{tpu_custom_call.1} parent=95 // pred_fallthru
          _
        %v901 = vld [vmem:[#allocation2] sm:$0xff]
        %v902 = vpack.c.bf16 %v901, %v901
        %v903 = vld [vmem:[%s834] sm:$0xf]
        %v904 = vld [vmem:[%s834 + $0x4] sm:$0xf]
        %v905 = vld [vmem:[%s834 + $0x8] sm:$0xf]
        %v906 = vld [vmem:[%s834 + $0xc] sm:$0xf]
        %v907 = vld [vmem:[%s834 + $0x10] sm:$0xf]
        %v908 = vld [vmem:[%s834 + $0x14] sm:$0xf]
        %v909 = vld [vmem:[%s834 + $0x18] sm:$0xf]
        %v910 = vld [vmem:[%s834 + $0x1c] sm:$0xf]
        %v911 = vld [vmem:[%s848] sm:$0x1]
        %v912 = vld [vmem:[%s848 + $0x1] sm:$0x1]
        %v915 = vperm.slane %v911, 0
        %v916 = vperm.slane %v912, 0
        %v923 = vunpack.c.l.b16 %v903
        %v924 = vunpack.c.l.b16 %v904
        %v925 = vunpack.c.l.b16 %v905
        %v926 = vunpack.c.l.b16 %v906
        %v927 = vpack.c.b16 %v924, %v923
        %v928 = vpack.c.b16 %v926, %v925
        %vm931 = vcmask 261120
        %v933 = vsel %vm931, %v902, 0
        %935 = vmatpush.bf16.msra.mxu0 0
        %936 = vmatpush.bf16.msra.mxu0 0
        %937 = vmatpush.bf16.msra.mxu0 0
        %938 = vmatpush.bf16.msra.mxu0 0
        %939 = vmatpush.bf16.msra.mxu0 0
        %940 = vmatpush.bf16.msra.mxu0 0
        %941 = vmatpush.bf16.msra.mxu0 %v928
        %942 = vmatpush.bf16.msra.mxu0 %v927
        %943 = vmatmul.bf16.gmra.mxu0 %v933
        %v944 = vpop.f32.mrf.mxu0
        %v945 = vadd.f32 %v915, %v944
        %v946 = vpop.f32.mrf.mxu0
        %947 = vdwg.mxu0
        %v952 = vunpack.c.l.b16 %v907
        %v953 = vunpack.c.l.b16 %v908
        %v954 = vunpack.c.l.b16 %v909
        %v955 = vunpack.c.l.b16 %v910
        %v956 = vpack.c.b16 %v953, %v952
        %v957 = vpack.c.b16 %v955, %v954
        %960 = vmatpush.bf16.msra.mxu0 0
        %961 = vmatpush.bf16.msra.mxu0 0
        %962 = vmatpush.bf16.msra.mxu0 0
        %963 = vmatpush.bf16.msra.mxu0 0
        %964 = vmatpush.bf16.msra.mxu0 0
        %965 = vmatpush.bf16.msra.mxu0 0
        %966 = vmatpush.bf16.msra.mxu0 %v957
        %967 = vmatpush.bf16.msra.mxu0 %v956
        %968 = vmatmul.bf16.gmra.mxu0 %v933
        %v969 = vpop.f32.mrf.mxu0
        %v970 = vadd.f32 %v916, %v969
        %v971 = vpop.f32.mrf.mxu0
        %972 = vdwg.mxu0
        %v973 = vld [vmem:[%s839] sm:$0xf]
        %v974 = vld [vmem:[%s839 + $0x4] sm:$0xf]
        %v975 = vld [vmem:[%s839 + $0x8] sm:$0xf]
        %v976 = vld [vmem:[%s839 + $0xc] sm:$0xf]
        %v977 = vld [vmem:[%s839 + $0x10] sm:$0xf]
        %v978 = vld [vmem:[%s839 + $0x14] sm:$0xf]
        %v979 = vld [vmem:[%s839 + $0x18] sm:$0xf]
        %v980 = vld [vmem:[%s839 + $0x1c] sm:$0xf]
        %v981 = vld [vmem:[%s852] sm:$0x1]
        %v982 = vld [vmem:[%s852 + $0x1] sm:$0x1]
        %v985 = vperm.slane %v981, 0
        %v986 = vperm.slane %v982, 0
        %v993 = vunpack.c.l.b16 %v973
        %v994 = vunpack.c.l.b16 %v974
        %v995 = vunpack.c.l.b16 %v975
        %v996 = vunpack.c.l.b16 %v976
        %v997 = vpack.c.b16 %v994, %v993
        %v998 = vpack.c.b16 %v996, %v995
        %1001 = vmatpush.bf16.msra.mxu0 0
        %1002 = vmatpush.bf16.msra.mxu0 0
        %1003 = vmatpush.bf16.msra.mxu0 0
        %1004 = vmatpush.bf16.msra.mxu0 0
        %1005 = vmatpush.bf16.msra.mxu0 0
        %1006 = vmatpush.bf16.msra.mxu0 0
        %1007 = vmatpush.bf16.msra.mxu0 %v998
        %1008 = vmatpush.bf16.msra.mxu0 %v997
        %1009 = vmatmul.bf16.gmra.mxu0 %v933
        %v1010 = vpop.f32.mrf.mxu0
        %v1011 = vadd.f32 %v985, %v1010
        %v1012 = vpop.f32.mrf.mxu0
        %1013 = vdwg.mxu0
        %v1018 = vunpack.c.l.b16 %v977
        %v1019 = vunpack.c.l.b16 %v978
        %v1020 = vunpack.c.l.b16 %v979
        %v1021 = vunpack.c.l.b16 %v980
        %v1022 = vpack.c.b16 %v1019, %v1018
        %v1023 = vpack.c.b16 %v1021, %v1020
        %1026 = vmatpush.bf16.msra.mxu0 0
        %1027 = vmatpush.bf16.msra.mxu0 0
        %1028 = vmatpush.bf16.msra.mxu0 0
        %1029 = vmatpush.bf16.msra.mxu0 0
        %1030 = vmatpush.bf16.msra.mxu0 0
        %1031 = vmatpush.bf16.msra.mxu0 0
        %1032 = vmatpush.bf16.msra.mxu0 %v1023
        %1033 = vmatpush.bf16.msra.mxu0 %v1022
        %1034 = vmatmul.bf16.gmra.mxu0 %v933
        %v1035 = vpop.f32.mrf.mxu0
        %v1036 = vadd.f32 %v986, %v1035
        %v1037 = vpop.f32.mrf.mxu0
        %1038 = vdwg.mxu0
        %v1039 = vld [vmem:[%s844] sm:$0xf]
        %v1040 = vld [vmem:[%s844 + $0x4] sm:$0xf]
        %v1041 = vld [vmem:[%s844 + $0x8] sm:$0xf]
        %v1042 = vld [vmem:[%s844 + $0xc] sm:$0xf]
        %v1043 = vld [vmem:[%s844 + $0x10] sm:$0xf]
        %v1044 = vld [vmem:[%s844 + $0x14] sm:$0xf]
        %v1045 = vld [vmem:[%s844 + $0x18] sm:$0xf]
        %v1046 = vld [vmem:[%s844 + $0x1c] sm:$0xf]
        %v1047 = vld [vmem:[%s856] sm:$0x1]
        %v1048 = vld [vmem:[%s856 + $0x1] sm:$0x1]
        %v1051 = vperm.slane %v1047, 0
        %v1052 = vperm.slane %v1048, 0
        %v1059 = vunpack.c.l.b16 %v1039
        %v1060 = vunpack.c.l.b16 %v1040
        %v1061 = vunpack.c.l.b16 %v1041
        %v1062 = vunpack.c.l.b16 %v1042
        %v1063 = vpack.c.b16 %v1060, %v1059
        %v1064 = vpack.c.b16 %v1062, %v1061
        %1067 = vmatpush.bf16.msra.mxu0 0
        %1068 = vmatpush.bf16.msra.mxu0 0
        %1069 = vmatpush.bf16.msra.mxu0 0
        %1070 = vmatpush.bf16.msra.mxu0 0
        %1071 = vmatpush.bf16.msra.mxu0 0
        %1072 = vmatpush.bf16.msra.mxu0 0
        %1073 = vmatpush.bf16.msra.mxu0 %v1064
        %1074 = vmatpush.bf16.msra.mxu0 %v1063
        %1075 = vmatmul.bf16.gmra.mxu0 %v933
        %v1076 = vpop.f32.mrf.mxu0
        %v1077 = vadd.f32 %v1051, %v1076
        %v1078 = vpop.f32.mrf.mxu0
        %1079 = vdwg.mxu0
        %v1084 = vunpack.c.l.b16 %v1043
        %v1085 = vunpack.c.l.b16 %v1044
        %v1086 = vunpack.c.l.b16 %v1045
        %v1087 = vunpack.c.l.b16 %v1046
        %v1088 = vpack.c.b16 %v1085, %v1084
        %v1089 = vpack.c.b16 %v1087, %v1086
        %1092 = vmatpush.bf16.msra.mxu0 0
        %1093 = vmatpush.bf16.msra.mxu0 0
        %1094 = vmatpush.bf16.msra.mxu0 0
        %1095 = vmatpush.bf16.msra.mxu0 0
        %1096 = vmatpush.bf16.msra.mxu0 0
        %1097 = vmatpush.bf16.msra.mxu0 0
        %1098 = vmatpush.bf16.msra.mxu0 %v1089
        %1099 = vmatpush.bf16.msra.mxu0 %v1088
        %1100 = vmatmul.bf16.gmra.mxu0 %v933
        %v1101 = vpop.f32.mrf.mxu0
        %v1102 = vadd.f32 %v1052, %v1101
        %v1103 = vpop.f32.mrf.mxu0
        %1104 = vdwg.mxu0
        %v1105 = vpack.c.bf16 %v945, %v945
        %v1106 = vpack.c.bf16 %v970, %v970
        %v1107 = vpack.c.bf16 %v1011, %v1011
        %v1108 = vpack.c.bf16 %v1036, %v1036
        %vm1109 = vcmask 130048
        %v1111 = vsel %vm1109, %v1105, 0
        %v1114 = vsel %vm1109, %v1107, 0
        %1116 = vmatpush.bf16.xpose.msra.mxu0 0
        %1117 = vmatpush.bf16.xpose.msra.mxu0 0
        %1118 = vmatpush.bf16.xpose.msra.mxu0 0
        %1119 = vmatpush.bf16.xpose.msra.mxu0 0
        %1120 = vmatpush.bf16.xpose.msra.mxu0 0
        %1121 = vmatpush.bf16.xpose.msra.mxu0 0
        %1122 = vmatpush.bf16.xpose.msra.mxu0 0
        %1123 = vmatpush.bf16.xpose.msra.mxu0 %v1114
        %1124 = vmatmul.bf16.gmra.mxu0 %v1111
        %v1125 = vpop.f32.mrf.mxu0
        %v1126 = vadd.f32 0.0, %v1125
        %v1127 = vpop.f32.mrf.mxu0
        %1128 = vdwg.mxu0
        %v1130 = vsel %vm1109, %v1106, 0
        %v1133 = vsel %vm1109, %v1108, 0
        %1135 = vmatpush.bf16.xpose.msra.mxu0 0
        %1136 = vmatpush.bf16.xpose.msra.mxu0 0
        %1137 = vmatpush.bf16.xpose.msra.mxu0 0
        %1138 = vmatpush.bf16.xpose.msra.mxu0 0
        %1139 = vmatpush.bf16.xpose.msra.mxu0 0
        %1140 = vmatpush.bf16.xpose.msra.mxu0 0
        %1141 = vmatpush.bf16.xpose.msra.mxu0 0
        %1142 = vmatpush.bf16.xpose.msra.mxu0 %v1133
        %1143 = vmatmul.bf16.gmra.mxu0 %v1130
        %v1144 = vpop.f32.mrf.mxu0
        %v1145 = vadd.f32 0.0, %v1144
        %v1146 = vpop.f32.mrf.mxu0
        %1147 = vdwg.mxu0
        %v1148 = vmul.f32 %v1126, 0.25
        %v1149 = vmul.f32 %v1145, 0.25
        %v1150 = vld [vmem:[%s1] sm:$0xff]
        %v1151 = vld [vmem:[%s829] sm:$0x1]
        %v1153 = vperm.slane %v1151, 0
        %v1155 = vadd.f32 %v1150, %v1153
        %v1156 = vadd.f32 %v1148, %v1155
        %v1157 = vadd.f32 %v1149, %v1155
        %vm1158 = vcmask 64512
        %v1159 = vsel %vm1158, %v1156, -inf
        %1160 = vmax.xlane.f32.xlu0 %v1159
        %v1161 = vpop.xlane.xlu0 %1160
        %v1162 = vsel %vm1158, %v1157, -inf
        %1163 = vmax.xlane.f32.xlu0 %v1162
        %v1164 = vpop.xlane.xlu0 %1163
        %v1165 = vsub.f32 %v1156, %v1161
        %v1166 = vsub.f32 %v1157, %v1164
        %v1167 = vmul.f32 %v1165, 1.442695
        %v1168 = vpow.pop %v1167
        %v1169 = vmul.f32 %v1166, 1.442695
        %v1170 = vpow.pop %v1169
        %v1171 = vsel %vm1158, %v1168, 0.0
        %1172 = vadd.xlane.f32.xlu0 %v1171
        %v1173 = vpop.xlane.xlu0 %1172
        %v1174 = vsel %vm1158, %v1170, 0.0
        %1175 = vadd.xlane.f32.xlu0 %v1174
        %v1176 = vpop.xlane.xlu0 %1175
        %v1177 = vrcp.pop %v1173
        %v1178 = vrcp.pop %v1176
        %v1179 = vmul.f32 %v1168, %v1177
        %v1180 = vmul.f32 %v1170, %v1178
        %v1181 = vpack.c.bf16 %v1179, %v1179
        %v1182 = vpack.c.bf16 %v1180, %v1180
        %v1183 = vpack.c.bf16 %v1077, %v1077
        %v1184 = vpack.c.bf16 %v1102, %v1102
        %v1186 = vsel %vm1158, %v1181, 0
        %vm1188 = vcmask 1043456
        %v1190 = vsel %vm1188, %v1183, 0
        %1192 = vmatpush.bf16.msra.mxu0 0
        %1193 = vmatpush.bf16.msra.mxu0 0
        %1194 = vmatpush.bf16.msra.mxu0 0
        %1195 = vmatpush.bf16.msra.mxu0 0
        %1196 = vmatpush.bf16.msra.mxu0 0
        %1197 = vmatpush.bf16.msra.mxu0 0
        %1198 = vmatpush.bf16.msra.mxu0 0
        %1199 = vmatpush.bf16.msra.mxu0 %v1190
        %1200 = vmatmul.bf16.gmra.mxu0 %v1186
        %v1201 = vpop.f32.mrf.mxu0
        %v1202 = vadd.f32 0.0, %v1201
        %v1203 = vpop.f32.mrf.mxu0
        %1204 = vdwg.mxu0
        %v1206 = vsel %vm1158, %v1182, 0
        %v1209 = vsel %vm1188, %v1184, 0
        %1211 = vmatpush.bf16.msra.mxu0 0
        %1212 = vmatpush.bf16.msra.mxu0 0
        %1213 = vmatpush.bf16.msra.mxu0 0
        %1214 = vmatpush.bf16.msra.mxu0 0
        %1215 = vmatpush.bf16.msra.mxu0 0
        %1216 = vmatpush.bf16.msra.mxu0 0
        %1217 = vmatpush.bf16.msra.mxu0 0
        %1218 = vmatpush.bf16.msra.mxu0 %v1209
        %1219 = vmatmul.bf16.gmra.mxu0 %v1206
        %v1220 = vpop.f32.mrf.mxu0
        %v1221 = vadd.f32 0.0, %v1220
        %v1222 = vpop.f32.mrf.mxu0
        %1223 = vdwg.mxu0
        %v1224 = vpack.c.bf16 %v1202, %v1202
        %v1225 = vpack.c.bf16 %v1221, %v1221
        %v1226 = vld [vmem:[%s861] sm:$0xf]
        %v1227 = vld [vmem:[%s861 + $0x4] sm:$0xf]
        %v1228 = vld [vmem:[%s861 + $0x8] sm:$0xf]
        %v1229 = vld [vmem:[%s861 + $0xc] sm:$0xf]
        %v1232 = vunpack.c.l.b16 %v1226
        %v1233 = vunpack.c.l.b16 %v1227
        %v1234 = vpack.c.b16 %v1233, %v1232
        %v1237 = vsel %vm1109, %v1224, 0
        %1239 = vmatpush.bf16.msra.mxu0 0
        %1240 = vmatpush.bf16.msra.mxu0 0
        %1241 = vmatpush.bf16.msra.mxu0 0
        %1242 = vmatpush.bf16.msra.mxu0 0
        %1243 = vmatpush.bf16.msra.mxu0 0
        %1244 = vmatpush.bf16.msra.mxu0 0
        %1245 = vmatpush.bf16.msra.mxu0 0
        %1246 = vmatpush.bf16.msra.mxu0 %v1234
        %1247 = vmatmul.bf16.gmra.mxu0 %v1237
        %v1248 = vpop.f32.mrf.mxu0
        %v1249 = vadd.f32 0.0, %v1248
        %v1250 = vpop.f32.mrf.mxu0
        %1251 = vdwg.mxu0
        %v1254 = vunpack.c.l.b16 %v1228
        %v1255 = vunpack.c.l.b16 %v1229
        %v1256 = vpack.c.b16 %v1255, %v1254
        %v1259 = vsel %vm1109, %v1225, 0
        %1261 = vmatpush.bf16.msra.mxu0 0
        %1262 = vmatpush.bf16.msra.mxu0 0
        %1263 = vmatpush.bf16.msra.mxu0 0
        %1264 = vmatpush.bf16.msra.mxu0 0
        %1265 = vmatpush.bf16.msra.mxu0 0
        %1266 = vmatpush.bf16.msra.mxu0 0
        %1267 = vmatpush.bf16.msra.mxu0 0
        %1268 = vmatpush.bf16.msra.mxu0 %v1256
        %1269 = vmatmul.bf16.gmra.mxu0 %v1259
        %v1270 = vpop.f32.mrf.mxu0
        %v1271 = vadd.f32 0.0, %v1270
        %v1272 = vpop.f32.mrf.mxu0
        %1273 = vdwg.mxu0
        %v1274 = vsel %vm931, %v1249, 0.0
        %v1275 = vsel %vm931, %v1271, 0.0
        %v1276 = vadd.f32 %v1274, %v1275
        %v1277 = vld [vmem:[%s864] sm:$0x1]
        %v1279 = vperm.slane %v1277, 0
        %v1281 = vadd.f32 %v1276, %v1279
        %v1282 = vadd.f32 %v901, %v1281
        %v1283 = vsel %vm931, %v1282, 0.0
        %1284 = vadd.xlane.f32.xlu0 %v1283
        %v1285 = vpop.xlane.xlu0 %1284
        %v1286 = vrcp.pop 32.0
        %v1287 = vmul.f32 32.0, %v1286
        %v1288 = vsub.f32 1.0, %v1287
        %v1289 = vmul.f32 %v1286, %v1288
        %v1290 = vadd.f32 %v1286, %v1289
        %vm1291 = vweird.f32 %v1286
        %v1292 = vsel %vm1291, %v1286, %v1290
        %v1293 = vmul.f32 %v1285, %v1292
        %v1294 = vsub.f32 %v1282, %v1293
        %v1295 = vmul.f32 %v1294, %v1294
        %v1296 = vsel %vm931, %v1295, 0.0
        %1297 = vadd.xlane.f32.xlu0 %v1296
        %v1298 = vpop.xlane.xlu0 %1297
        %v1299 = vmul.f32 %v1298, %v1292
        %v1300 = vadd.f32 %v1299, 1e-05
        %v1301 = vrsqrt.pop %v1300
        %v1302 = vmul.f32 %v1301, %v1300
        %v1303 = vmul.f32 %v1302, %v1301
        %v1304 = vmul.f32 0.5, %v1303
        %v1305 = vsub.f32 1.5, %v1304
        %v1306 = vmul.f32 %v1301, %v1305
        %vm1307 = vweird.f32 %v1300
        %vm1308 = vweird.f32 %v1301
        %vm1309 = vmor %vm1307, %vm1308
        %v1310 = vsel %vm1309, %v1301, %v1306
        %v1311 = vmul.f32 %v1294, %v1310
        %v1312 = vld [vmem:[%s867] sm:$0x1]
        %v1314 = vperm.slane %v1312, 0
        %v1316 = vmul.f32 %v1311, %v1314
        %v1317 = vld [vmem:[%s870] sm:$0x1]
        %v1319 = vperm.slane %v1317, 0
        %v1321 = vadd.f32 %v1316, %v1319
        %v1322 = vpack.c.bf16 %v1321, %v1321
        %v1323 = vld [vmem:[%s875] sm:$0xf]
        %v1324 = vld [vmem:[%s875 + $0x4] sm:$0xf]
        %v1325 = vld [vmem:[%s875 + $0x8] sm:$0xf]
        %v1326 = vld [vmem:[%s875 + $0xc] sm:$0xf]
        %v1327 = vld [vmem:[%s878] sm:$0x1]
        %v1329 = vperm.slane %v1327, 0
        %v1335 = vunpack.c.l.b16 %v1323
        %v1336 = vunpack.c.l.b16 %v1324
        %v1337 = vunpack.c.l.b16 %v1325
        %v1338 = vunpack.c.l.b16 %v1326
        %v1339 = vpack.c.b16 %v1336, %v1335
        %v1340 = vpack.c.b16 %v1338, %v1337
        %v1344 = vsel %vm931, %v1322, 0
        %1346 = vmatpush.bf16.msra.mxu0 0
        %1347 = vmatpush.bf16.msra.mxu0 0
        %1348 = vmatpush.bf16.msra.mxu0 0
        %1349 = vmatpush.bf16.msra.mxu0 0
        %1350 = vmatpush.bf16.msra.mxu0 0
        %1351 = vmatpush.bf16.msra.mxu0 0
        %1352 = vmatpush.bf16.msra.mxu0 %v1340
        %1353 = vmatpush.bf16.msra.mxu0 %v1339
        %1354 = vmatmul.bf16.gmra.mxu0 %v1344
        %v1355 = vpop.f32.mrf.mxu0
        %v1356 = vadd.f32 %v1329, %v1355
        %v1357 = vpop.f32.mrf.mxu0
        %1358 = vdwg.mxu0
        %v1359 = vmax.f32 %v1356, 0.0
        %v1360 = vpack.c.bf16 %v1359, %v1359
        %v1361 = vld [vmem:[%s883] sm:$0xf]
        %v1362 = vld [vmem:[%s883 + $0x4] sm:$0xf]
        %v1363 = vld [vmem:[%s883 + $0x8] sm:$0xf]
        %v1364 = vld [vmem:[%s883 + $0xc] sm:$0xf]
        %v1365 = vld [vmem:[%s883 + $0x10] sm:$0xf]
        %v1366 = vld [vmem:[%s883 + $0x14] sm:$0xf]
        %v1367 = vld [vmem:[%s883 + $0x18] sm:$0xf]
        %v1368 = vld [vmem:[%s883 + $0x1c] sm:$0xf]
        %v1369 = vld [vmem:[%s886] sm:$0x1]
        %v1371 = vperm.slane %v1369, 0
        %v1381 = vunpack.c.l.b16 %v1361
        %v1382 = vunpack.c.l.b16 %v1362
        %v1383 = vunpack.c.l.b16 %v1363
        %v1384 = vunpack.c.l.b16 %v1364
        %v1385 = vunpack.c.l.b16 %v1365
        %v1386 = vunpack.c.l.b16 %v1366
        %v1387 = vunpack.c.l.b16 %v1367
        %v1388 = vunpack.c.l.b16 %v1368
        %v1389 = vpack.c.b16 %v1382, %v1381
        %v1390 = vpack.c.b16 %v1384, %v1383
        %v1391 = vpack.c.b16 %v1386, %v1385
        %v1392 = vpack.c.b16 %v1388, %v1387
        %vm1397 = vcmask 523264
        %v1399 = vsel %vm1397, %v1360, 0
        %1401 = vmatpush.bf16.msra.mxu0 0
        %1402 = vmatpush.bf16.msra.mxu0 0
        %1403 = vmatpush.bf16.msra.mxu0 0
        %1404 = vmatpush.bf16.msra.mxu0 0
        %1405 = vmatpush.bf16.msra.mxu0 %v1392
        %1406 = vmatpush.bf16.msra.mxu0 %v1391
        %1407 = vmatpush.bf16.msra.mxu0 %v1390
        %1408 = vmatpush.bf16.msra.mxu0 %v1389
        %1409 = vmatmul.bf16.gmra.mxu0 %v1399
        %v1410 = vpop.f32.mrf.mxu0
        %v1411 = vadd.f32 %v1371, %v1410
        %v1412 = vpop.f32.mrf.mxu0
        %1413 = vdwg.mxu0
        %v1414 = vadd.f32 %v1321, %v1411
        %v1415 = vsel %vm931, %v1414, 0.0
        %1416 = vadd.xlane.f32.xlu0 %v1415
        %v1417 = vpop.xlane.xlu0 %1416
        %v1418 = vmul.f32 %v1417, %v1292
        %v1419 = vsub.f32 %v1414, %v1418
        %v1420 = vmul.f32 %v1419, %v1419
        %v1421 = vsel %vm931, %v1420, 0.0
        %1422 = vadd.xlane.f32.xlu0 %v1421
        %v1423 = vpop.xlane.xlu0 %1422
        %v1424 = vmul.f32 %v1423, %v1292
        %v1425 = vadd.f32 %v1424, 1e-05
        %v1426 = vrsqrt.pop %v1425
        %v1427 = vmul.f32 %v1426, %v1425
        %v1428 = vmul.f32 %v1427, %v1426
        %v1429 = vmul.f32 0.5, %v1428
        %v1430 = vsub.f32 1.5, %v1429
        %v1431 = vmul.f32 %v1426, %v1430
        %vm1432 = vweird.f32 %v1425
        %vm1433 = vweird.f32 %v1426
        %vm1434 = vmor %vm1432, %vm1433
        %v1435 = vsel %vm1434, %v1426, %v1431
        %v1436 = vmul.f32 %v1419, %v1435
        %v1437 = vld [vmem:[%s889] sm:$0x1]
        %v1439 = vperm.slane %v1437, 0
        %v1441 = vmul.f32 %v1436, %v1439
        %v1442 = vld [vmem:[%s892] sm:$0x1]
        %v1444 = vperm.slane %v1442, 0
        %v1446 = vadd.f32 %v1441, %v1444
        %1447 = vst.msk [vmem:[#allocation2] sm:$0xff] %vm931, %v1446
        %p1448 = scmp.eq.s32.totalorder %s38, 1
        // Predicated region
        $region101: #{tpu_custom_call.1} parent=95 // pred_check
          %p1449 = pneg %p1448
        $region102: #{tpu_custom_call.1} parent=95 // pred_check_branch
          %1451 = sbr.rel (%p1449) target = $region104
        $region103: #{tpu_custom_call.1} parent=95 // pred_region
          %1452 = vst.msk [vmem:[%s822] sm:$0xff] %vm931, %v1446
        $region104: #{tpu_custom_call.1} parent=95 // pred_fallthru
          _
        %s1453 = sand.u32 %s542, 1
        %s1454 = scalar_lea.sflag [#allocation4], %s1453
        %s1455 = sand.u32 %s542, 1
        %s1456 = smul.addr %s1455, 8
        %s1457 = scalar_lea.vmem [#allocation3], %s1456
        // Predicated region
        $region105: #{tpu_custom_call.1} parent=95 // pred_check
          %p1458 = pneg %p552
        $region106: #{tpu_custom_call.1} parent=95 // pred_check_branch
          %1460 = sbr.rel (%p1458) target = $region108
        $region107: #{tpu_custom_call.1} parent=95 // pred_region
          %1462 = vsyncadd %s1454, 0
          %s1463 = smul.addr %s37, 8
          %s1464 = scalar_lea.hbm %s19, %s1463
          %s1466 = sshll.u32 %s1457, 4
          %s1467 = int_to_ptr.vmem [resolvable:$true] %s1466
          %s1468 = sshll.u32 %s1464, 4
          %s1469 = int_to_ptr.hbm [resolvable:$true] %s1468
          %1471 = dma.vmem_to_hbm [thread:$0]  %s1467, 128, %s1469, %s1454
        $region108: #{tpu_custom_call.1} parent=95 // pred_fallthru
          _
      $region96: #{tpu_custom_call.1} parent=5 // pred_fallthru
        _
      %p1472 = scmp.le.s32.totalorder 2, %s28
      // Predicated region
      $region109: #{tpu_custom_call.1} parent=5 // pred_check
        %p1473 = pneg %p1472
      $region110: #{tpu_custom_call.1} parent=5 // pred_check_branch
        %1475 = sbr.rel (%p1473) target = $region112
      $region111: #{tpu_custom_call.1} parent=5 // pred_region
        %s1476 = ssub.s32 %s28, 2
        // Predicated region
        $region113: #{tpu_custom_call.1} parent=111 // pred_check
          %p1477 = pneg %p558
        $region114: #{tpu_custom_call.1} parent=111 // pred_check_branch
          %1479 = sbr.rel (%p1477) target = $region116
        $region115: #{tpu_custom_call.1} parent=111 // pred_region
          %s1480 = sand.u32 %s543, 1
          %s1481 = scalar_lea.sflag [#allocation4], %s1480
          %s1482 = sand.u32 %s543, 1
          %s1483 = smul.addr %s1482, 8
          %s1484 = scalar_lea.vmem [#allocation3], %s1483
          %1486 = dma.done %s1481, 128
        $region116: #{tpu_custom_call.1} parent=111 // pred_fallthru
          _
      $region112: #{tpu_custom_call.1} parent=5 // pred_fallthru
        _
    $region6: #{tpu_custom_call.1} parent=1 // loop_footer
      %s32 = sadd.s32 1, %s28
    $region7: #{tpu_custom_call.1} parent=1 // loop_footer_branch
      %27 = sbr.rel target = $region3
    $region8: #{tpu_custom_call.1} parent=1 // loop_exit
      _
    %1487 = vsyncpa [#allocation4], 1
    %s1488 = scalar_lea.sflag [#allocation4], 1
    %1489 = vsyncpa %s1488, 1

</llo_original>
